<compile_context>
chip_gen: v7x
topology: tpu7x:2x2x1
jax: 0.10.0
libtpu: 0.0.40
codegen_flags: <defaults>
</compile_context>

<pallas_src>
import functools

import jax
import jax.numpy as jnp
import numpy as np
from jax.experimental import pallas as pl
from jax.experimental.pallas import tpu as pltpu

DIMS = 32
HEAD = 4
CTX = 8
BATCH = 2
LN_EPS = 1e-5
NEG_INF = -1e30


# ---------------------------------------------------------------------------
# kernel-side helpers
# ---------------------------------------------------------------------------
def _layernorm_noaffine(x, eps=LN_EPS):
    # affine (weight/bias) is folded into the following matmul host-side
    mu = jnp.mean(x, axis=-1, keepdims=True)
    var = jnp.mean(jnp.square(x - mu), axis=-1, keepdims=True)
    return (x - mu) * jax.lax.rsqrt(var + eps)


def _softmax_lastdim(s):
    s = s - jnp.max(s, axis=-1, keepdims=True)
    e = jnp.exp(s)
    return e * pl.reciprocal(jnp.sum(e, axis=-1, keepdims=True), approx=True)


# ---------------------------------------------------------------------------
# fused per-batch kernel: attention + tgate + mlp, one (C, D) slab in VMEM
# ---------------------------------------------------------------------------
def _residual_kernel(x_ref, rope_ref, wqkv_ref, wo_ref, wcg_ref, w1_ref, w2_ref,
                     bias_ref, o_ref, *, head, causal):
    x = x_ref[...]                                   # (C, D) f32
    ctx, dims = x.shape
    hd = dims // head

    bias = bias_ref[...]                             # (4, 5D) f32 packed slab
    b_qkv = bias[0]                                  # (5D,)
    b1 = bias[1, :4 * dims]
    b2 = bias[2, :dims]
    bcg = bias[3, :8]

    # ---- stage 1: attentiona (+ residual) ---------------------------------
    # LN affine + attention scale already folded into wqkv/b_qkv host-side.
    xn = _layernorm_noaffine(x)
    qkv = jnp.dot(xn.astype(jnp.bfloat16), wqkv_ref[...],
                  preferred_element_type=jnp.float32) + b_qkv      # (C, 5D)
    cos = rope_ref[0]                                # (C, D)
    sin = rope_ref[1]
    q = qkv[:, 0 * dims:1 * dims] * cos + qkv[:, 1 * dims:2 * dims] * sin
    k = qkv[:, 2 * dims:3 * dims] * cos + qkv[:, 3 * dims:4 * dims] * sin
    v = qkv[:, 4 * dims:5 * dims]

    if causal:
        row = jax.lax.broadcasted_iota(jnp.int32, (ctx, ctx), 0)
        col = jax.lax.broadcasted_iota(jnp.int32, (ctx, ctx), 1)
        attn_bias = jnp.where(col <= row, jnp.float32(0.0), jnp.float32(NEG_INF))

    # Per-head accumulation directly into x (no pv concatenate, no (D,D) matmul)
    for h in range(head):                            # small, unrolled
        sl = slice(h * hd, (h + 1) * hd)
        qh = q[:, sl].astype(jnp.bfloat16)
        kh = k[:, sl].astype(jnp.bfloat16)
        vh = v[:, sl].astype(jnp.bfloat16)
        s = jax.lax.dot_general(
            qh, kh, dimension_numbers=(((1,), (1,)), ((), ())),
            preferred_element_type=jnp.float32)      # (C, C), scale pre-folded
        if causal:
            s = s + attn_bias
        p = _softmax_lastdim(s)
        pv = jnp.dot(p.astype(jnp.bfloat16), vh,
                     preferred_element_type=jnp.float32)            # (C, hd)
        x = x + jnp.dot(pv.astype(jnp.bfloat16), wo_ref[h],
                        preferred_element_type=jnp.float32)         # (C, D)

    # ---- stage 2: tgate (+ residual) --------------------------------------
    cg = jnp.dot(x.astype(jnp.bfloat16), wcg_ref[...],
                 preferred_element_type=jnp.float32) + bcg           # (C, 8)
    ntypes = cg.shape[-1] // 2
    types = _softmax_lastdim(cg[:, :ntypes])         # classifier softmax
    gates = jax.nn.sigmoid(cg[:, ntypes:])           # per-type sigmoid gates
    x = x + jnp.sum(gates * types, axis=-1, keepdims=True)

    # ---- stage 3: mlp(lna(x)) (+ residual) --------------------------------
    xm = _layernorm_noaffine(x)                      # lna weight folded into w1
    hmid = jnp.dot(xm.astype(jnp.bfloat16), w1_ref[...],
                   preferred_element_type=jnp.float32) + b1
    hmid = hmid * jax.nn.sigmoid(hmid)               # SiLU
    x = x + jnp.dot(hmid.astype(jnp.bfloat16), w2_ref[...],
                    preferred_element_type=jnp.float32) + b2

    o_ref[...] = x


# ---------------------------------------------------------------------------
# wrapper
# ---------------------------------------------------------------------------
_KP_NAMES = ("rope", "w_qkv", "wo", "wcg", "w1", "w2", "bias")


def _rep_spec(arr):
    # full-array block, same block index for every grid step (stays resident)
    if arr.ndim == 2:
        return pl.BlockSpec(arr.shape, lambda b: (0, 0))
    return pl.BlockSpec(arr.shape, lambda b: (0, 0, 0))


def residual_forward(x, kparams, mask=None, xa=None):
    # mirrors residual.forward(x, xa=None, mask=None)
    # TODO(synk): attentionb (xa) branch omitted (broken in reference, see header).
    B, C, D = x.shape
    x2d = x.reshape(B * C, D)
    weights = tuple(kparams[n] for n in _KP_NAMES)
    kernel = functools.partial(_residual_kernel, head=HEAD, causal=mask is not None)
    in_specs = [pl.BlockSpec((C, D), lambda b: (b, 0))] + [_rep_spec(w) for w in weights]
    out2d = pl.pallas_call(
        kernel,
        grid=(B,),
        out_shape=jax.ShapeDtypeStruct((B * C, D), jnp.float32),
        in_specs=in_specs,
        out_specs=pl.BlockSpec((C, D), lambda b: (b, 0)),
        compiler_params=pltpu.CompilerParams(dimension_semantics=("parallel",)),
    )(x2d, *weights)
    return out2d.reshape(B, C, D)


# ---------------------------------------------------------------------------
# parameter / RoPE-table setup (glue, plain numpy/JAX)
# ---------------------------------------------------------------------------
def rope_tables(ctx, dims, head, theta=10000.0):
    hd = dims // head
    hd2 = hd // 2
    hi = 2595.0 * np.log10(1.0 + 4000.0 / 200.0)
    mel = 10.0 ** (np.linspace(0.0, hi, hd2) / 2595.0) - 1.0
    freqs_base = 200.0 * mel / 1000.0
    freqs = theta / 220.0 * freqs_base                      # (hd2,)
    pos = np.arange(ctx, dtype=np.float64)
    ang = pos[:, None] * freqs[None, :]                     # (ctx, hd2)
    cos = np.repeat(np.cos(ang), 2, axis=-1)                # (ctx, hd)
    sin = np.repeat(np.sin(ang), 2, axis=-1)
    sign = np.tile(np.array([-1.0, 1.0]), hd2)
    sin = sin * sign[None, :]
    cos_big = np.tile(cos, (1, head)).astype(np.float32)    # (ctx, dims)
    sin_big = np.tile(sin, (1, head)).astype(np.float32)
    p_hd = np.zeros((hd, hd), np.float32)
    for i in range(hd2):
        p_hd[2 * i, 2 * i + 1] = 1.0
        p_hd[2 * i + 1, 2 * i] = 1.0
    p_big = np.kron(np.eye(head, dtype=np.float32), p_hd)   # (dims, dims)
    return jnp.asarray(cos_big), jnp.asarray(sin_big), jnp.asarray(p_big)


def init_params(key, dims=DIMS, head=HEAD, ctx=CTX):
    ks = jax.random.split(key, 14)
    s = 0.05
    cos, sin, perm = rope_tables(ctx, dims, head)
    f32 = jnp.float32
    atta = dict(
        ln_w=jnp.ones((1, dims), f32),
        ln_b=jnp.zeros((1, dims), f32),
        wq=s * jax.random.normal(ks[0], (dims, dims), f32),
        wk=s * jax.random.normal(ks[1], (dims, dims), f32),
        wv=s * jax.random.normal(ks[2], (dims, dims), f32),
        bk=s * jax.random.normal(ks[10], (1, dims), f32),   # nn.Linear kv has bias
        bv=s * jax.random.normal(ks[11], (1, dims), f32),
        wo=s * jax.random.normal(ks[3], (dims, dims), f32),
        cos=cos, sin=sin, perm=perm,
    )
    tg = dict(
        wc=s * jax.random.normal(ks[4], (dims, 4), f32),
        bc=jnp.zeros((1, 4), f32),
        wg=s * jax.random.normal(ks[5], (dims, 4), f32),
        bg=jnp.zeros((1, 4), f32),
    )
    mlp = dict(
        ln_w=jnp.ones((1, dims), f32),
        w1=s * jax.random.normal(ks[6], (dims, 4 * dims), f32),
        b1=s * jax.random.normal(ks[7], (1, 4 * dims), f32),
        w2=s * jax.random.normal(ks[8], (4 * dims, dims), f32),
        b2=s * jax.random.normal(ks[9], (1, dims), f32),
    )
    return dict(atta=atta, tgate=tg, mlp=mlp)


def build_kernel_params(params, head=HEAD):
    """Host-side weight fusion:
       - LN affine folded into QKV / MLP-in weights (+ folded biases)
       - attention scale hd**-0.5 folded into the q column blocks
       - RoPE permutation matmuls folded into the wide (D, 5D) QKV weight
       - out-proj pre-split per head as (head, hd, D)
       - tgate classifier+gate merged into one (D, 8) matmul
       - all 1-row params packed into a single (4, 5D) f32 slab
       - cos/sin packed into one (2, C, D) slab (NOT tiled by batch)
       - matmul weights stored bf16
    """
    pa, pt, pm = params["atta"], params["tgate"], params["mlp"]
    D = pa["wq"].shape[0]
    hd = D // head
    scale = hd ** -0.5
    perm = pa["perm"]
    bf16, f32 = jnp.bfloat16, jnp.float32

    ln_w_col = pa["ln_w"].reshape(D, 1)              # diag(ln_w) @ W == ln_w_col * W
    ln_b = pa["ln_b"]                                # (1, D)

    Wq = ln_w_col * pa["wq"]
    Wk = ln_w_col * pa["wk"]
    Wv = ln_w_col * pa["wv"]
    bq = ln_b @ pa["wq"]                             # que has no bias; LN bias only
    bk = ln_b @ pa["wk"] + pa["bk"]
    bv = ln_b @ pa["wv"] + pa["bv"]
    Wqp, Wkp = Wq @ perm, Wk @ perm
    bqp, bkp = bq @ perm, bk @ perm
    # fold attention scale into the q / q@perm column blocks
    Wq, Wqp, bq, bqp = Wq * scale, Wqp * scale, bq * scale, bqp * scale

    w_qkv = jnp.concatenate([Wq, Wqp, Wk, Wkp, Wv], axis=1).astype(bf16)    # (D, 5D)
    b_qkv = jnp.concatenate([bq, bqp, bk, bkp, bv], axis=1).astype(f32)     # (1, 5D)

    wo = pa["wo"].reshape(head, hd, D).astype(bf16)                         # per-head
    wcg = jnp.concatenate([pt["wc"], pt["wg"]], axis=1).astype(bf16)        # (D, 8)
    bcg = jnp.concatenate([pt["bc"], pt["bg"]], axis=1).astype(f32)         # (1, 8)

    lna_w_col = pm["ln_w"].reshape(D, 1)
    w1 = (lna_w_col * pm["w1"]).astype(bf16)                                # (D, 4D)
    w2 = pm["w2"].astype(bf16)                                              # (4D, D)

    width = 5 * D
    def _pad_row(row):
        row = jnp.asarray(row, f32).reshape(-1)
        return jnp.pad(row, (0, width - row.shape[0]))
    bias_slab = jnp.stack([_pad_row(b_qkv), _pad_row(pm["b1"]),
                           _pad_row(pm["b2"]), _pad_row(bcg)])              # (4, 5D)

    rope = jnp.stack([pa["cos"], pa["sin"]])                                # (2, C, D)

    return dict(rope=rope, w_qkv=w_qkv, wo=wo, wcg=wcg, w1=w1, w2=w2, bias=bias_slab)


# ---------------------------------------------------------------------------
# pure-JAX reference (for correctness check only)
# ---------------------------------------------------------------------------
def residual_reference(x, params, causal=False):
    def ln(v, w, b=None):
        mu = v.mean(-1, keepdims=True)
        var = ((v - mu) ** 2).mean(-1, keepdims=True)
        y = (v - mu) / jnp.sqrt(var + LN_EPS) * w
        return y + b if b is not None else y

    pa = params["atta"]
    xn = ln(x, pa["ln_w"], pa["ln_b"])
    q = xn @ pa["wq"]
    k = xn @ pa["wk"] + pa["bk"]
    v = xn @ pa["wv"] + pa["bv"]
    q = q * pa["cos"] + (q @ pa["perm"]) * pa["sin"]
    k = k * pa["cos"] + (k @ pa["perm"]) * pa["sin"]
    B, C, D = x.shape
    hd = D // HEAD
    qh = q.reshape(B, C, HEAD, hd).transpose(0, 2, 1, 3)
    kh = k.reshape(B, C, HEAD, hd).transpose(0, 2, 1, 3)
    vh = v.reshape(B, C, HEAD, hd).transpose(0, 2, 1, 3)
    s = jnp.einsum("bhid,bhjd->bhij", qh, kh) * hd ** -0.5
    if causal:
        row = jnp.arange(C)[:, None]
        col = jnp.arange(C)[None, :]
        s = jnp.where(col > row, -jnp.inf, s)
    p = jax.nn.softmax(s, axis=-1)
    wv = jnp.einsum("bhij,bhjd->bhid", p, vh)
    wv = wv.transpose(0, 2, 1, 3).reshape(B, C, D)
    x = x + wv @ pa["wo"]

    pt = params["tgate"]
    types = jax.nn.softmax(x @ pt["wc"] + pt["bc"], axis=-1)
    gates = jax.nn.sigmoid(x @ pt["wg"] + pt["bg"])
    x = x + jnp.sum(gates * types, axis=-1, keepdims=True)

    pm = params["mlp"]
    xn = ln(x, pm["ln_w"])
    h = xn @ pm["w1"] + pm["b1"]
    h = h * jax.nn.sigmoid(h)
    x = x + (h @ pm["w2"] + pm["b2"])
    return x


if __name__ == "__main__":
    key = jax.random.PRNGKey(0)
    kx, kp = jax.random.split(key)
    params = init_params(kp)
    kparams = build_kernel_params(params, head=HEAD)
    x = jax.random.normal(kx, (BATCH, CTX, DIMS), jnp.float32)

    # non-causal path (mask=None, matches the `xa` stream usage in processor)
    out = jax.block_until_ready(residual_forward(x, kparams, mask=None))
    ref = residual_reference(x, params, causal=False)
    assert out.shape == x.shape and out.dtype == jnp.float32
    if not np.allclose(np.asarray(out), np.asarray(ref), atol=2e-2, rtol=2e-2):
        raise AssertionError("Pallas output mismatch vs reference (mask=None)")

    # causal path (mask is not None => attentiona applies a strict causal triangle)
    mask = jnp.full((CTX, CTX), -jnp.inf)
    out_c = jax.block_until_ready(residual_forward(x, kparams, mask=mask))
    ref_c = residual_reference(x, params, causal=True)
    if not np.allclose(np.asarray(out_c), np.asarray(ref_c), atol=2e-2, rtol=2e-2):
        raise AssertionError("Pallas output mismatch vs reference (causal)")

    print("KERNEL_OK")
</pallas_src>

<mosaic_0001>
module attributes {stable_mosaic.version = 11 : i64} {
  func.func @_residual_kernel(%arg0: i32, %arg1: memref<8x32xf32, #tpu.memory_space<vmem>>, %arg2: memref<2x8x32xf32, #tpu.memory_space<vmem>>, %arg3: memref<32x160xbf16, #tpu.memory_space<vmem>>, %arg4: memref<4x8x32xbf16, #tpu.memory_space<vmem>>, %arg5: memref<32x8xbf16, #tpu.memory_space<vmem>>, %arg6: memref<32x128xbf16, #tpu.memory_space<vmem>>, %arg7: memref<128x32xbf16, #tpu.memory_space<vmem>>, %arg8: memref<4x160xf32, #tpu.memory_space<vmem>>, %arg9: memref<8x32xf32, #tpu.memory_space<vmem>>) attributes {dimension_semantics = [#tpu.dimension_semantics<parallel>], iteration_bounds = array<i64: 2>, scalar_prefetch = 0 : i64, scratch_operands = 0 : i64, tpu.core_type = #tpu.core_type<tc>, window_params = [{transform_indices = @transform_0, window_bounds = array<i64: 8, 32>}, {pipeline_mode = #tpu.pipeline_mode<synchronous>, transform_indices = @transform_1, window_bounds = array<i64: 2, 8, 32>}, {pipeline_mode = #tpu.pipeline_mode<synchronous>, transform_indices = @transform_2, window_bounds = array<i64: 32, 160>}, {pipeline_mode = #tpu.pipeline_mode<synchronous>, transform_indices = @transform_3, window_bounds = array<i64: 4, 8, 32>}, {pipeline_mode = #tpu.pipeline_mode<synchronous>, transform_indices = @transform_4, window_bounds = array<i64: 32, 8>}, {pipeline_mode = #tpu.pipeline_mode<synchronous>, transform_indices = @transform_5, window_bounds = array<i64: 32, 128>}, {pipeline_mode = #tpu.pipeline_mode<synchronous>, transform_indices = @transform_6, window_bounds = array<i64: 128, 32>}, {pipeline_mode = #tpu.pipeline_mode<synchronous>, transform_indices = @transform_7, window_bounds = array<i64: 4, 160>}, {transform_indices = @transform_8, window_bounds = array<i64: 8, 32>}]} {
    %c0 = arith.constant 0 : index
    %c0_0 = arith.constant 0 : index
    %0 = vector.load %arg1[%c0, %c0_0] : memref<8x32xf32, #tpu.memory_space<vmem>>, vector<8x32xf32>
    %c0_1 = arith.constant 0 : index
    %c0_2 = arith.constant 0 : index
    %1 = vector.load %arg8[%c0_1, %c0_2] : memref<4x160xf32, #tpu.memory_space<vmem>>, vector<4x160xf32>
    %2 = vector.extract_strided_slice %1 {offsets = [0, 0], sizes = [1, 160], strides = [1, 1]} : vector<4x160xf32> to vector<1x160xf32>
    %3 = vector.shape_cast %2 : vector<1x160xf32> to vector<160xf32>
    %4 = vector.extract_strided_slice %1 {offsets = [1, 0], sizes = [1, 128], strides = [1, 1]} : vector<4x160xf32> to vector<1x128xf32>
    %5 = vector.shape_cast %4 : vector<1x128xf32> to vector<128xf32>
    %6 = vector.extract_strided_slice %1 {offsets = [2, 0], sizes = [1, 32], strides = [1, 1]} : vector<4x160xf32> to vector<1x32xf32>
    %7 = vector.shape_cast %6 : vector<1x32xf32> to vector<32xf32>
    %8 = vector.extract_strided_slice %1 {offsets = [3, 0], sizes = [1, 8], strides = [1, 1]} : vector<4x160xf32> to vector<1x8xf32>
    %9 = vector.shape_cast %8 : vector<1x8xf32> to vector<8xf32>
    %cst = arith.constant dense<0.000000e+00> : vector<8xf32>
    %10 = vector.multi_reduction <add>, %0, %cst [1] : vector<8x32xf32> to vector<8xf32>
    %11 = vector.shape_cast %10 : vector<8xf32> to vector<8x1xf32>
    %cst_3 = arith.constant 3.200000e+01 : f32
    %12 = vector.broadcast %cst_3 : f32 to vector<8x1xf32>
    %13 = arith.divf %11, %12 : vector<8x1xf32>
    %14 = vector.broadcast %13 : vector<8x1xf32> to vector<8x32xf32>
    %15 = arith.subf %0, %14 : vector<8x32xf32>
    %16 = arith.mulf %15, %15 : vector<8x32xf32>
    %cst_4 = arith.constant dense<0.000000e+00> : vector<8xf32>
    %17 = vector.multi_reduction <add>, %16, %cst_4 [1] : vector<8x32xf32> to vector<8xf32>
    %18 = vector.shape_cast %17 : vector<8xf32> to vector<8x1xf32>
    %cst_5 = arith.constant 3.200000e+01 : f32
    %19 = vector.broadcast %cst_5 : f32 to vector<8x1xf32>
    %20 = arith.divf %18, %19 : vector<8x1xf32>
    %21 = vector.broadcast %13 : vector<8x1xf32> to vector<8x32xf32>
    %22 = arith.subf %0, %21 : vector<8x32xf32>
    %cst_6 = arith.constant 9.99999974E-6 : f32
    %23 = vector.broadcast %cst_6 : f32 to vector<8x1xf32>
    %24 = arith.addf %20, %23 : vector<8x1xf32>
    %25 = math.rsqrt %24 : vector<8x1xf32>
    %26 = vector.broadcast %25 : vector<8x1xf32> to vector<8x32xf32>
    %27 = arith.mulf %22, %26 : vector<8x32xf32>
    %28 = arith.truncf %27 : vector<8x32xf32> to vector<8x32xbf16>
    %c0_7 = arith.constant 0 : index
    %c0_8 = arith.constant 0 : index
    %29 = vector.load %arg3[%c0_7, %c0_8] : memref<32x160xbf16, #tpu.memory_space<vmem>>, vector<32x160xbf16>
    %cst_9 = arith.constant dense<0.000000e+00> : vector<8x160xf32>
    %30 = tpu.matmul %28, %29, %cst_9 {dimension_numbers = #tpu.dot_dimension_numbers<[1], [0], [0], [1], [0, 0, 1, 1], [], []>} : vector<8x32xbf16>, vector<32x160xbf16>, vector<8x160xf32> -> vector<8x160xf32>
    %31 = vector.shape_cast %3 : vector<160xf32> to vector<1x160xf32>
    %32 = vector.broadcast %31 : vector<1x160xf32> to vector<8x160xf32>
    %33 = arith.addf %30, %32 : vector<8x160xf32>
    %c0_10 = arith.constant 0 : index
    %c0_11 = arith.constant 0 : index
    %c0_12 = arith.constant 0 : index
    %34 = vector.load %arg2[%c0_10, %c0_11, %c0_12] : memref<2x8x32xf32, #tpu.memory_space<vmem>>, vector<1x8x32xf32>
    %35 = vector.shape_cast %34 : vector<1x8x32xf32> to vector<8x32xf32>
    %c1 = arith.constant 1 : index
    %c0_13 = arith.constant 0 : index
    %c0_14 = arith.constant 0 : index
    %36 = vector.load %arg2[%c1, %c0_13, %c0_14] : memref<2x8x32xf32, #tpu.memory_space<vmem>>, vector<1x8x32xf32>
    %37 = vector.shape_cast %36 : vector<1x8x32xf32> to vector<8x32xf32>
    %38 = vector.extract_strided_slice %33 {offsets = [0, 0], sizes = [8, 32], strides = [1, 1]} : vector<8x160xf32> to vector<8x32xf32>
    %39 = arith.mulf %38, %35 : vector<8x32xf32>
    %40 = vector.extract_strided_slice %33 {offsets = [0, 32], sizes = [8, 32], strides = [1, 1]} : vector<8x160xf32> to vector<8x32xf32>
    %41 = arith.mulf %40, %37 : vector<8x32xf32>
    %42 = arith.addf %39, %41 : vector<8x32xf32>
    %43 = vector.extract_strided_slice %33 {offsets = [0, 64], sizes = [8, 32], strides = [1, 1]} : vector<8x160xf32> to vector<8x32xf32>
    %44 = arith.mulf %43, %35 : vector<8x32xf32>
    %45 = vector.extract_strided_slice %33 {offsets = [0, 96], sizes = [8, 32], strides = [1, 1]} : vector<8x160xf32> to vector<8x32xf32>
    %46 = arith.mulf %45, %37 : vector<8x32xf32>
    %47 = arith.addf %44, %46 : vector<8x32xf32>
    %48 = vector.extract_strided_slice %33 {offsets = [0, 128], sizes = [8, 32], strides = [1, 1]} : vector<8x160xf32> to vector<8x32xf32>
    %49 = vector.extract_strided_slice %42 {offsets = [0, 0], sizes = [8, 8], strides = [1, 1]} : vector<8x32xf32> to vector<8x8xf32>
    %50 = arith.truncf %49 : vector<8x8xf32> to vector<8x8xbf16>
    %51 = vector.extract_strided_slice %47 {offsets = [0, 0], sizes = [8, 8], strides = [1, 1]} : vector<8x32xf32> to vector<8x8xf32>
    %52 = arith.truncf %51 : vector<8x8xf32> to vector<8x8xbf16>
    %53 = vector.extract_strided_slice %48 {offsets = [0, 0], sizes = [8, 8], strides = [1, 1]} : vector<8x32xf32> to vector<8x8xf32>
    %54 = arith.truncf %53 : vector<8x8xf32> to vector<8x8xbf16>
    %cst_15 = arith.constant dense<0.000000e+00> : vector<8x8xf32>
    %55 = tpu.matmul %50, %52, %cst_15 {dimension_numbers = #tpu.dot_dimension_numbers<[1], [1], [0], [0], [0, 0, 1, 0], [], []>} : vector<8x8xbf16>, vector<8x8xbf16>, vector<8x8xf32> -> vector<8x8xf32>
    %cst_16 = arith.constant dense<0xFF800000> : vector<8xf32>
    %56 = vector.multi_reduction <maximumf>, %55, %cst_16 [1] : vector<8x8xf32> to vector<8xf32>
    %57 = vector.shape_cast %56 : vector<8xf32> to vector<8x1xf32>
    %58 = vector.broadcast %57 : vector<8x1xf32> to vector<8x8xf32>
    %59 = arith.subf %55, %58 : vector<8x8xf32>
    %60 = math.exp %59 : vector<8x8xf32>
    %cst_17 = arith.constant dense<0.000000e+00> : vector<8xf32>
    %61 = vector.multi_reduction <add>, %60, %cst_17 [1] : vector<8x8xf32> to vector<8xf32>
    %62 = vector.shape_cast %61 : vector<8xf32> to vector<8x1xf32>
    %63 = tpu.reciprocal %62 {approx = true} : vector<8x1xf32> -> vector<8x1xf32>
    %64 = vector.broadcast %63 : vector<8x1xf32> to vector<8x8xf32>
    %65 = arith.mulf %60, %64 : vector<8x8xf32>
    %66 = arith.truncf %65 : vector<8x8xf32> to vector<8x8xbf16>
    %cst_18 = arith.constant dense<0.000000e+00> : vector<8x8xf32>
    %67 = tpu.matmul %66, %54, %cst_18 {dimension_numbers = #tpu.dot_dimension_numbers<[1], [0], [0], [1], [0, 0, 1, 1], [], []>} : vector<8x8xbf16>, vector<8x8xbf16>, vector<8x8xf32> -> vector<8x8xf32>
    %68 = arith.truncf %67 : vector<8x8xf32> to vector<8x8xbf16>
    %c0_19 = arith.constant 0 : index
    %c0_20 = arith.constant 0 : index
    %c0_21 = arith.constant 0 : index
    %69 = vector.load %arg4[%c0_19, %c0_20, %c0_21] : memref<4x8x32xbf16, #tpu.memory_space<vmem>>, vector<1x8x32xbf16>
    %70 = vector.shape_cast %69 : vector<1x8x32xbf16> to vector<8x32xbf16>
    %cst_22 = arith.constant dense<0.000000e+00> : vector<8x32xf32>
    %71 = tpu.matmul %68, %70, %cst_22 {dimension_numbers = #tpu.dot_dimension_numbers<[1], [0], [0], [1], [0, 0, 1, 1], [], []>} : vector<8x8xbf16>, vector<8x32xbf16>, vector<8x32xf32> -> vector<8x32xf32>
    %72 = arith.addf %0, %71 : vector<8x32xf32>
    %73 = vector.extract_strided_slice %42 {offsets = [0, 8], sizes = [8, 8], strides = [1, 1]} : vector<8x32xf32> to vector<8x8xf32>
    %74 = arith.truncf %73 : vector<8x8xf32> to vector<8x8xbf16>
    %75 = vector.extract_strided_slice %47 {offsets = [0, 8], sizes = [8, 8], strides = [1, 1]} : vector<8x32xf32> to vector<8x8xf32>
    %76 = arith.truncf %75 : vector<8x8xf32> to vector<8x8xbf16>
    %77 = vector.extract_strided_slice %48 {offsets = [0, 8], sizes = [8, 8], strides = [1, 1]} : vector<8x32xf32> to vector<8x8xf32>
    %78 = arith.truncf %77 : vector<8x8xf32> to vector<8x8xbf16>
    %cst_23 = arith.constant dense<0.000000e+00> : vector<8x8xf32>
    %79 = tpu.matmul %74, %76, %cst_23 {dimension_numbers = #tpu.dot_dimension_numbers<[1], [1], [0], [0], [0, 0, 1, 0], [], []>} : vector<8x8xbf16>, vector<8x8xbf16>, vector<8x8xf32> -> vector<8x8xf32>
    %cst_24 = arith.constant dense<0xFF800000> : vector<8xf32>
    %80 = vector.multi_reduction <maximumf>, %79, %cst_24 [1] : vector<8x8xf32> to vector<8xf32>
    %81 = vector.shape_cast %80 : vector<8xf32> to vector<8x1xf32>
    %82 = vector.broadcast %81 : vector<8x1xf32> to vector<8x8xf32>
    %83 = arith.subf %79, %82 : vector<8x8xf32>
    %84 = math.exp %83 : vector<8x8xf32>
    %cst_25 = arith.constant dense<0.000000e+00> : vector<8xf32>
    %85 = vector.multi_reduction <add>, %84, %cst_25 [1] : vector<8x8xf32> to vector<8xf32>
    %86 = vector.shape_cast %85 : vector<8xf32> to vector<8x1xf32>
    %87 = tpu.reciprocal %86 {approx = true} : vector<8x1xf32> -> vector<8x1xf32>
    %88 = vector.broadcast %87 : vector<8x1xf32> to vector<8x8xf32>
    %89 = arith.mulf %84, %88 : vector<8x8xf32>
    %90 = arith.truncf %89 : vector<8x8xf32> to vector<8x8xbf16>
    %cst_26 = arith.constant dense<0.000000e+00> : vector<8x8xf32>
    %91 = tpu.matmul %90, %78, %cst_26 {dimension_numbers = #tpu.dot_dimension_numbers<[1], [0], [0], [1], [0, 0, 1, 1], [], []>} : vector<8x8xbf16>, vector<8x8xbf16>, vector<8x8xf32> -> vector<8x8xf32>
    %92 = arith.truncf %91 : vector<8x8xf32> to vector<8x8xbf16>
    %c1_27 = arith.constant 1 : index
    %c0_28 = arith.constant 0 : index
    %c0_29 = arith.constant 0 : index
    %93 = vector.load %arg4[%c1_27, %c0_28, %c0_29] : memref<4x8x32xbf16, #tpu.memory_space<vmem>>, vector<1x8x32xbf16>
    %94 = vector.shape_cast %93 : vector<1x8x32xbf16> to vector<8x32xbf16>
    %cst_30 = arith.constant dense<0.000000e+00> : vector<8x32xf32>
    %95 = tpu.matmul %92, %94, %cst_30 {dimension_numbers = #tpu.dot_dimension_numbers<[1], [0], [0], [1], [0, 0, 1, 1], [], []>} : vector<8x8xbf16>, vector<8x32xbf16>, vector<8x32xf32> -> vector<8x32xf32>
    %96 = arith.addf %72, %95 : vector<8x32xf32>
    %97 = vector.extract_strided_slice %42 {offsets = [0, 16], sizes = [8, 8], strides = [1, 1]} : vector<8x32xf32> to vector<8x8xf32>
    %98 = arith.truncf %97 : vector<8x8xf32> to vector<8x8xbf16>
    %99 = vector.extract_strided_slice %47 {offsets = [0, 16], sizes = [8, 8], strides = [1, 1]} : vector<8x32xf32> to vector<8x8xf32>
    %100 = arith.truncf %99 : vector<8x8xf32> to vector<8x8xbf16>
    %101 = vector.extract_strided_slice %48 {offsets = [0, 16], sizes = [8, 8], strides = [1, 1]} : vector<8x32xf32> to vector<8x8xf32>
    %102 = arith.truncf %101 : vector<8x8xf32> to vector<8x8xbf16>
    %cst_31 = arith.constant dense<0.000000e+00> : vector<8x8xf32>
    %103 = tpu.matmul %98, %100, %cst_31 {dimension_numbers = #tpu.dot_dimension_numbers<[1], [1], [0], [0], [0, 0, 1, 0], [], []>} : vector<8x8xbf16>, vector<8x8xbf16>, vector<8x8xf32> -> vector<8x8xf32>
    %cst_32 = arith.constant dense<0xFF800000> : vector<8xf32>
    %104 = vector.multi_reduction <maximumf>, %103, %cst_32 [1] : vector<8x8xf32> to vector<8xf32>
    %105 = vector.shape_cast %104 : vector<8xf32> to vector<8x1xf32>
    %106 = vector.broadcast %105 : vector<8x1xf32> to vector<8x8xf32>
    %107 = arith.subf %103, %106 : vector<8x8xf32>
    %108 = math.exp %107 : vector<8x8xf32>
    %cst_33 = arith.constant dense<0.000000e+00> : vector<8xf32>
    %109 = vector.multi_reduction <add>, %108, %cst_33 [1] : vector<8x8xf32> to vector<8xf32>
    %110 = vector.shape_cast %109 : vector<8xf32> to vector<8x1xf32>
    %111 = tpu.reciprocal %110 {approx = true} : vector<8x1xf32> -> vector<8x1xf32>
    %112 = vector.broadcast %111 : vector<8x1xf32> to vector<8x8xf32>
    %113 = arith.mulf %108, %112 : vector<8x8xf32>
    %114 = arith.truncf %113 : vector<8x8xf32> to vector<8x8xbf16>
    %cst_34 = arith.constant dense<0.000000e+00> : vector<8x8xf32>
    %115 = tpu.matmul %114, %102, %cst_34 {dimension_numbers = #tpu.dot_dimension_numbers<[1], [0], [0], [1], [0, 0, 1, 1], [], []>} : vector<8x8xbf16>, vector<8x8xbf16>, vector<8x8xf32> -> vector<8x8xf32>
    %116 = arith.truncf %115 : vector<8x8xf32> to vector<8x8xbf16>
    %c2 = arith.constant 2 : index
    %c0_35 = arith.constant 0 : index
    %c0_36 = arith.constant 0 : index
    %117 = vector.load %arg4[%c2, %c0_35, %c0_36] : memref<4x8x32xbf16, #tpu.memory_space<vmem>>, vector<1x8x32xbf16>
    %118 = vector.shape_cast %117 : vector<1x8x32xbf16> to vector<8x32xbf16>
    %cst_37 = arith.constant dense<0.000000e+00> : vector<8x32xf32>
    %119 = tpu.matmul %116, %118, %cst_37 {dimension_numbers = #tpu.dot_dimension_numbers<[1], [0], [0], [1], [0, 0, 1, 1], [], []>} : vector<8x8xbf16>, vector<8x32xbf16>, vector<8x32xf32> -> vector<8x32xf32>
    %120 = arith.addf %96, %119 : vector<8x32xf32>
    %121 = vector.extract_strided_slice %42 {offsets = [0, 24], sizes = [8, 8], strides = [1, 1]} : vector<8x32xf32> to vector<8x8xf32>
    %122 = arith.truncf %121 : vector<8x8xf32> to vector<8x8xbf16>
    %123 = vector.extract_strided_slice %47 {offsets = [0, 24], sizes = [8, 8], strides = [1, 1]} : vector<8x32xf32> to vector<8x8xf32>
    %124 = arith.truncf %123 : vector<8x8xf32> to vector<8x8xbf16>
    %125 = vector.extract_strided_slice %48 {offsets = [0, 24], sizes = [8, 8], strides = [1, 1]} : vector<8x32xf32> to vector<8x8xf32>
    %126 = arith.truncf %125 : vector<8x8xf32> to vector<8x8xbf16>
    %cst_38 = arith.constant dense<0.000000e+00> : vector<8x8xf32>
    %127 = tpu.matmul %122, %124, %cst_38 {dimension_numbers = #tpu.dot_dimension_numbers<[1], [1], [0], [0], [0, 0, 1, 0], [], []>} : vector<8x8xbf16>, vector<8x8xbf16>, vector<8x8xf32> -> vector<8x8xf32>
    %cst_39 = arith.constant dense<0xFF800000> : vector<8xf32>
    %128 = vector.multi_reduction <maximumf>, %127, %cst_39 [1] : vector<8x8xf32> to vector<8xf32>
    %129 = vector.shape_cast %128 : vector<8xf32> to vector<8x1xf32>
    %130 = vector.broadcast %129 : vector<8x1xf32> to vector<8x8xf32>
    %131 = arith.subf %127, %130 : vector<8x8xf32>
    %132 = math.exp %131 : vector<8x8xf32>
    %cst_40 = arith.constant dense<0.000000e+00> : vector<8xf32>
    %133 = vector.multi_reduction <add>, %132, %cst_40 [1] : vector<8x8xf32> to vector<8xf32>
    %134 = vector.shape_cast %133 : vector<8xf32> to vector<8x1xf32>
    %135 = tpu.reciprocal %134 {approx = true} : vector<8x1xf32> -> vector<8x1xf32>
    %136 = vector.broadcast %135 : vector<8x1xf32> to vector<8x8xf32>
    %137 = arith.mulf %132, %136 : vector<8x8xf32>
    %138 = arith.truncf %137 : vector<8x8xf32> to vector<8x8xbf16>
    %cst_41 = arith.constant dense<0.000000e+00> : vector<8x8xf32>
    %139 = tpu.matmul %138, %126, %cst_41 {dimension_numbers = #tpu.dot_dimension_numbers<[1], [0], [0], [1], [0, 0, 1, 1], [], []>} : vector<8x8xbf16>, vector<8x8xbf16>, vector<8x8xf32> -> vector<8x8xf32>
    %140 = arith.truncf %139 : vector<8x8xf32> to vector<8x8xbf16>
    %c3 = arith.constant 3 : index
    %c0_42 = arith.constant 0 : index
    %c0_43 = arith.constant 0 : index
    %141 = vector.load %arg4[%c3, %c0_42, %c0_43] : memref<4x8x32xbf16, #tpu.memory_space<vmem>>, vector<1x8x32xbf16>
    %142 = vector.shape_cast %141 : vector<1x8x32xbf16> to vector<8x32xbf16>
    %cst_44 = arith.constant dense<0.000000e+00> : vector<8x32xf32>
    %143 = tpu.matmul %140, %142, %cst_44 {dimension_numbers = #tpu.dot_dimension_numbers<[1], [0], [0], [1], [0, 0, 1, 1], [], []>} : vector<8x8xbf16>, vector<8x32xbf16>, vector<8x32xf32> -> vector<8x32xf32>
    %144 = arith.addf %120, %143 : vector<8x32xf32>
    %145 = arith.truncf %144 : vector<8x32xf32> to vector<8x32xbf16>
    %c0_45 = arith.constant 0 : index
    %c0_46 = arith.constant 0 : index
    %146 = vector.load %arg5[%c0_45, %c0_46] : memref<32x8xbf16, #tpu.memory_space<vmem>>, vector<32x8xbf16>
    %cst_47 = arith.constant dense<0.000000e+00> : vector<8x8xf32>
    %147 = tpu.matmul %145, %146, %cst_47 {dimension_numbers = #tpu.dot_dimension_numbers<[1], [0], [0], [1], [0, 0, 1, 1], [], []>} : vector<8x32xbf16>, vector<32x8xbf16>, vector<8x8xf32> -> vector<8x8xf32>
    %148 = vector.shape_cast %9 : vector<8xf32> to vector<1x8xf32>
    %149 = vector.broadcast %148 : vector<1x8xf32> to vector<8x8xf32>
    %150 = arith.addf %147, %149 : vector<8x8xf32>
    %151 = vector.extract_strided_slice %150 {offsets = [0, 0], sizes = [8, 4], strides = [1, 1]} : vector<8x8xf32> to vector<8x4xf32>
    %cst_48 = arith.constant dense<0xFF800000> : vector<8xf32>
    %152 = vector.multi_reduction <maximumf>, %151, %cst_48 [1] : vector<8x4xf32> to vector<8xf32>
    %153 = vector.shape_cast %152 : vector<8xf32> to vector<8x1xf32>
    %154 = vector.broadcast %153 : vector<8x1xf32> to vector<8x4xf32>
    %155 = arith.subf %151, %154 : vector<8x4xf32>
    %156 = math.exp %155 : vector<8x4xf32>
    %cst_49 = arith.constant dense<0.000000e+00> : vector<8xf32>
    %157 = vector.multi_reduction <add>, %156, %cst_49 [1] : vector<8x4xf32> to vector<8xf32>
    %158 = vector.shape_cast %157 : vector<8xf32> to vector<8x1xf32>
    %159 = tpu.reciprocal %158 {approx = true} : vector<8x1xf32> -> vector<8x1xf32>
    %160 = vector.broadcast %159 : vector<8x1xf32> to vector<8x4xf32>
    %161 = arith.mulf %156, %160 : vector<8x4xf32>
    %162 = vector.extract_strided_slice %150 {offsets = [0, 4], sizes = [8, 4], strides = [1, 1]} : vector<8x8xf32> to vector<8x4xf32>
    %163 = arith.negf %162 : vector<8x4xf32>
    %164 = math.exp %163 : vector<8x4xf32>
    %cst_50 = arith.constant 1.000000e+00 : f32
    %165 = vector.broadcast %cst_50 : f32 to vector<8x4xf32>
    %166 = arith.addf %165, %164 : vector<8x4xf32>
    %167 = arith.divf %165, %166 : vector<8x4xf32>
    %168 = arith.mulf %167, %161 : vector<8x4xf32>
    %cst_51 = arith.constant dense<0.000000e+00> : vector<8xf32>
    %169 = vector.multi_reduction <add>, %168, %cst_51 [1] : vector<8x4xf32> to vector<8xf32>
    %170 = vector.shape_cast %169 : vector<8xf32> to vector<8x1xf32>
    %171 = vector.broadcast %170 : vector<8x1xf32> to vector<8x32xf32>
    %172 = arith.addf %144, %171 : vector<8x32xf32>
    %cst_52 = arith.constant dense<0.000000e+00> : vector<8xf32>
    %173 = vector.multi_reduction <add>, %172, %cst_52 [1] : vector<8x32xf32> to vector<8xf32>
    %174 = vector.shape_cast %173 : vector<8xf32> to vector<8x1xf32>
    %cst_53 = arith.constant 3.200000e+01 : f32
    %175 = vector.broadcast %cst_53 : f32 to vector<8x1xf32>
    %176 = arith.divf %174, %175 : vector<8x1xf32>
    %177 = vector.broadcast %176 : vector<8x1xf32> to vector<8x32xf32>
    %178 = arith.subf %172, %177 : vector<8x32xf32>
    %179 = arith.mulf %178, %178 : vector<8x32xf32>
    %cst_54 = arith.constant dense<0.000000e+00> : vector<8xf32>
    %180 = vector.multi_reduction <add>, %179, %cst_54 [1] : vector<8x32xf32> to vector<8xf32>
    %181 = vector.shape_cast %180 : vector<8xf32> to vector<8x1xf32>
    %cst_55 = arith.constant 3.200000e+01 : f32
    %182 = vector.broadcast %cst_55 : f32 to vector<8x1xf32>
    %183 = arith.divf %181, %182 : vector<8x1xf32>
    %184 = vector.broadcast %176 : vector<8x1xf32> to vector<8x32xf32>
    %185 = arith.subf %172, %184 : vector<8x32xf32>
    %cst_56 = arith.constant 9.99999974E-6 : f32
    %186 = vector.broadcast %cst_56 : f32 to vector<8x1xf32>
    %187 = arith.addf %183, %186 : vector<8x1xf32>
    %188 = math.rsqrt %187 : vector<8x1xf32>
    %189 = vector.broadcast %188 : vector<8x1xf32> to vector<8x32xf32>
    %190 = arith.mulf %185, %189 : vector<8x32xf32>
    %191 = arith.truncf %190 : vector<8x32xf32> to vector<8x32xbf16>
    %c0_57 = arith.constant 0 : index
    %c0_58 = arith.constant 0 : index
    %192 = vector.load %arg6[%c0_57, %c0_58] : memref<32x128xbf16, #tpu.memory_space<vmem>>, vector<32x128xbf16>
    %cst_59 = arith.constant dense<0.000000e+00> : vector<8x128xf32>
    %193 = tpu.matmul %191, %192, %cst_59 {dimension_numbers = #tpu.dot_dimension_numbers<[1], [0], [0], [1], [0, 0, 1, 1], [], []>} : vector<8x32xbf16>, vector<32x128xbf16>, vector<8x128xf32> -> vector<8x128xf32>
    %194 = vector.shape_cast %5 : vector<128xf32> to vector<1x128xf32>
    %195 = vector.broadcast %194 : vector<1x128xf32> to vector<8x128xf32>
    %196 = arith.addf %193, %195 : vector<8x128xf32>
    %197 = arith.negf %196 : vector<8x128xf32>
    %198 = math.exp %197 : vector<8x128xf32>
    %cst_60 = arith.constant 1.000000e+00 : f32
    %199 = vector.broadcast %cst_60 : f32 to vector<8x128xf32>
    %200 = arith.addf %199, %198 : vector<8x128xf32>
    %201 = arith.divf %199, %200 : vector<8x128xf32>
    %202 = arith.mulf %196, %201 : vector<8x128xf32>
    %203 = arith.truncf %202 : vector<8x128xf32> to vector<8x128xbf16>
    %c0_61 = arith.constant 0 : index
    %c0_62 = arith.constant 0 : index
    %204 = vector.load %arg7[%c0_61, %c0_62] : memref<128x32xbf16, #tpu.memory_space<vmem>>, vector<128x32xbf16>
    %cst_63 = arith.constant dense<0.000000e+00> : vector<8x32xf32>
    %205 = tpu.matmul %203, %204, %cst_63 {dimension_numbers = #tpu.dot_dimension_numbers<[1], [0], [0], [1], [0, 0, 1, 1], [], []>} : vector<8x128xbf16>, vector<128x32xbf16>, vector<8x32xf32> -> vector<8x32xf32>
    %206 = arith.addf %172, %205 : vector<8x32xf32>
    %207 = vector.shape_cast %7 : vector<32xf32> to vector<1x32xf32>
    %208 = vector.broadcast %207 : vector<1x32xf32> to vector<8x32xf32>
    %209 = arith.addf %206, %208 : vector<8x32xf32>
    %c0_64 = arith.constant 0 : index
    %c0_65 = arith.constant 0 : index
    %210 = vector.load %arg9[%c0_64, %c0_65] : memref<8x32xf32, #tpu.memory_space<vmem>>, vector<8x32xf32>
    tpu.vector_store %arg9[%c0_64, %c0_65], %209 {strides = array<i32>} : memref<8x32xf32, #tpu.memory_space<vmem>>, vector<8x32xf32>,
    return
  }
  func.func @transform_0(%arg0: i32) -> (i32, i32) {
    %c0_i32 = arith.constant 0 : i32
    %c0_i32_0 = arith.constant 0 : i32
    return %arg0, %c0_i32 : i32, i32
  }
  func.func @transform_1(%arg0: i32) -> (i32, i32, i32) {
    %c0_i32 = arith.constant 0 : i32
    %c0_i32_0 = arith.constant 0 : i32
    %c0_i32_1 = arith.constant 0 : i32
    %c0_i32_2 = arith.constant 0 : i32
    return %c0_i32, %c0_i32_0, %c0_i32_1 : i32, i32, i32
  }
  func.func @transform_2(%arg0: i32) -> (i32, i32) {
    %c0_i32 = arith.constant 0 : i32
    %c0_i32_0 = arith.constant 0 : i32
    %c0_i32_1 = arith.constant 0 : i32
    return %c0_i32, %c0_i32_0 : i32, i32
  }
  func.func @transform_3(%arg0: i32) -> (i32, i32, i32) {
    %c0_i32 = arith.constant 0 : i32
    %c0_i32_0 = arith.constant 0 : i32
    %c0_i32_1 = arith.constant 0 : i32
    %c0_i32_2 = arith.constant 0 : i32
    return %c0_i32, %c0_i32_0, %c0_i32_1 : i32, i32, i32
  }
  func.func @transform_4(%arg0: i32) -> (i32, i32) {
    %c0_i32 = arith.constant 0 : i32
    %c0_i32_0 = arith.constant 0 : i32
    %c0_i32_1 = arith.constant 0 : i32
    return %c0_i32, %c0_i32_0 : i32, i32
  }
  func.func @transform_5(%arg0: i32) -> (i32, i32) {
    %c0_i32 = arith.constant 0 : i32
    %c0_i32_0 = arith.constant 0 : i32
    %c0_i32_1 = arith.constant 0 : i32
    return %c0_i32, %c0_i32_0 : i32, i32
  }
  func.func @transform_6(%arg0: i32) -> (i32, i32) {
    %c0_i32 = arith.constant 0 : i32
    %c0_i32_0 = arith.constant 0 : i32
    %c0_i32_1 = arith.constant 0 : i32
    return %c0_i32, %c0_i32_0 : i32, i32
  }
  func.func @transform_7(%arg0: i32) -> (i32, i32) {
    %c0_i32 = arith.constant 0 : i32
    %c0_i32_0 = arith.constant 0 : i32
    %c0_i32_1 = arith.constant 0 : i32
    return %c0_i32, %c0_i32_0 : i32, i32
  }
  func.func @transform_8(%arg0: i32) -> (i32, i32) {
    %c0_i32 = arith.constant 0 : i32
    %c0_i32_0 = arith.constant 0 : i32
    return %arg0, %c0_i32 : i32, i32
  }
}

</mosaic_0001>

<llo_original>
// kernel: tpu_custom_call.1
$region0: #{tpu_custom_call.1}
  #allocation0 [shape = 'u32[]', space=smem, size = 0x4, offset = 0x4, fixed_abs, tag = 'smem constant byte address 0x4 - core index']
  #allocation1 [shape = 'u32[144,128]{1,0:T(1,128)}', space=vmem, size = 0x12000, scoped, tag = 'internal scratch']
  %s0 = inlined_call_operand.vmem [shape: f32[16,32], index: 0, kind: input, shape index: {}]
  %s1 = inlined_call_operand.vmem [shape: f32[2,8,32], index: 1, kind: input, shape index: {}]
  %s2 = inlined_call_operand.vmem [shape: bf16[32,160], index: 2, kind: input, shape index: {}]
  %s3 = inlined_call_operand.vmem [shape: bf16[4,8,32], index: 3, kind: input, shape index: {}]
  %s4 = inlined_call_operand.vmem [shape: bf16[32,8], index: 4, kind: input, shape index: {}]
  %s5 = inlined_call_operand.vmem [shape: bf16[32,128], index: 5, kind: input, shape index: {}]
  %s6 = inlined_call_operand.vmem [shape: bf16[128,32], index: 6, kind: input, shape index: {}]
  %s7 = inlined_call_operand.vmem [shape: f32[4,160], index: 7, kind: input, shape index: {}]
  %s8 = inlined_call_operand.hbm [shape: f32[16,32], index: 8, kind: output, shape index: {}]
  %s9 = sld [smem:[#allocation0]]
  $region65: #{tpu_custom_call.1} parent=0
    _
  %s11 = ssub.s32 1, %s9
  %s12 = scalar_select 0, %s11, %s9
  $region1: #{tpu_custom_call.1} parent=0
    #allocation2 [shape = 'u8[8192]{0}', space=vmem, size = 0x2000, scoped, tag = 'output window, operand 0']
    #allocation3 [shape = 's32[2]{0}', space=sflag, size = 0x8, scoped, tag = 'scoped memory for tpu_custom_call.1']
    %13 = vsyncpa [#allocation3], 0
    %s14 = scalar_lea.sflag [#allocation3], 1
    %15 = vsyncpa %s14, 0
    loop: start=0, step=1, limit=4
    $region2: #{tpu_custom_call.1} parent=1 // loop_pre_header
      _
    $region3: #{tpu_custom_call.1} parent=1 // loop_header
      %s17 = sphi 0, %s21
      %p18 = scmp.ge.s32.totalorder %s17, 4
      %s27 = sphi 0, %s29
      %s30 = sphi 0, %s27
      %s31 = sphi 0, %s30
      %s47 = sphi 0, %s31
      %s51 = sphi 0, %s51
      %s53 = sphi 0, %s51
      %s54 = sphi 0, %s53
      %s68 = sphi 0, %s54
      %s72 = sphi 0, %s72
      %s74 = sphi 0, %s72
      %s75 = sphi 0, %s74
      %s89 = sphi 0, %s75
      %s93 = sphi 0, %s93
      %s95 = sphi 0, %s93
      %s96 = sphi 0, %s95
      %s110 = sphi 0, %s96
      %s114 = sphi 0, %s114
      %s116 = sphi 0, %s114
      %s117 = sphi 0, %s116
      %s131 = sphi 0, %s117
      %s135 = sphi 0, %s135
      %s137 = sphi 0, %s135
      %s138 = sphi 0, %s137
      %s152 = sphi 0, %s138
      %s156 = sphi 0, %s156
      %s158 = sphi 0, %s156
      %s159 = sphi 0, %s158
      %s173 = sphi 0, %s159
      %s177 = sphi 0, %s177
      %s179 = sphi 0, %s177
      %s180 = sphi 0, %s179
      %s194 = sphi 0, %s180
      %s200 = sphi 0, %s202
      %s203 = sphi 0, %s200
      %s204 = sphi 0, %s203
      %s220 = sphi 0, %s204
    $region4: #{tpu_custom_call.1} parent=1 // loop_header_branch
      %20 = sbr.rel (%p18) target = $region8
    $region5: #{tpu_custom_call.1} parent=1 // loop_body
      %s22 = ssub.s32 %s17, 1
      %s23 = ssub.s32 %s17, 2
      %s24 = sadd.s32 %s17, 1
      %s25 = ssub.s32 %s17, %s24
      %p26 = scmp.eq.s32.totalorder %s25, 0
      %s28 = sadd.s32 %s27, 1
      %s29 = scalar_select %p26, %s27, %s28
      %p32 = pneg %p26
      %p33 = scmp.eq.s32.totalorder %s17, 1
      %p34 = por %p32, %p33
      %p35 = scmp.ne.s32.totalorder %s27, %s30
      %p36 = scmp.eq.s32.totalorder %s17, 0
      %p37 = por %p35, %p36
      %p38 = scmp.ne.s32.totalorder %s27, %s30
      %p39 = scmp.eq.s32.totalorder %s22, 1
      %p40 = por %p38, %p39
      %p41 = scmp.ne.s32.totalorder %s30, %s31
      %p42 = scmp.eq.s32.totalorder %s22, 0
      %p43 = por %p41, %p42
      %p44 = scmp.ne.s32.totalorder %s30, %s31
      %p45 = scmp.eq.s32.totalorder %s23, 1
      %p46 = por %p44, %p45
      %p48 = scmp.ne.s32.totalorder %s31, %s47
      %p49 = scmp.eq.s32.totalorder %s23, 0
      %p50 = por %p48, %p49
      %s52 = sadd.s32 %s51, 1
      %p55 = scmp.eq.s32.totalorder %s17, 1
      %p56 = scmp.ne.s32.totalorder %s51, %s53
      %p57 = scmp.eq.s32.totalorder %s17, 0
      %p58 = por %p56, %p57
      %p59 = scmp.ne.s32.totalorder %s51, %s53
      %p60 = scmp.eq.s32.totalorder %s22, 1
      %p61 = por %p59, %p60
      %p62 = scmp.ne.s32.totalorder %s53, %s54
      %p63 = scmp.eq.s32.totalorder %s22, 0
      %p64 = por %p62, %p63
      %p65 = scmp.ne.s32.totalorder %s53, %s54
      %p66 = scmp.eq.s32.totalorder %s23, 1
      %p67 = por %p65, %p66
      %p69 = scmp.ne.s32.totalorder %s54, %s68
      %p70 = scmp.eq.s32.totalorder %s23, 0
      %p71 = por %p69, %p70
      %s73 = sadd.s32 %s72, 1
      %p76 = scmp.eq.s32.totalorder %s17, 1
      %p77 = scmp.ne.s32.totalorder %s72, %s74
      %p78 = scmp.eq.s32.totalorder %s17, 0
      %p79 = por %p77, %p78
      %p80 = scmp.ne.s32.totalorder %s72, %s74
      %p81 = scmp.eq.s32.totalorder %s22, 1
      %p82 = por %p80, %p81
      %p83 = scmp.ne.s32.totalorder %s74, %s75
      %p84 = scmp.eq.s32.totalorder %s22, 0
      %p85 = por %p83, %p84
      %p86 = scmp.ne.s32.totalorder %s74, %s75
      %p87 = scmp.eq.s32.totalorder %s23, 1
      %p88 = por %p86, %p87
      %p90 = scmp.ne.s32.totalorder %s75, %s89
      %p91 = scmp.eq.s32.totalorder %s23, 0
      %p92 = por %p90, %p91
      %s94 = sadd.s32 %s93, 1
      %p97 = scmp.eq.s32.totalorder %s17, 1
      %p98 = scmp.ne.s32.totalorder %s93, %s95
      %p99 = scmp.eq.s32.totalorder %s17, 0
      %p100 = por %p98, %p99
      %p101 = scmp.ne.s32.totalorder %s93, %s95
      %p102 = scmp.eq.s32.totalorder %s22, 1
      %p103 = por %p101, %p102
      %p104 = scmp.ne.s32.totalorder %s95, %s96
      %p105 = scmp.eq.s32.totalorder %s22, 0
      %p106 = por %p104, %p105
      %p107 = scmp.ne.s32.totalorder %s95, %s96
      %p108 = scmp.eq.s32.totalorder %s23, 1
      %p109 = por %p107, %p108
      %p111 = scmp.ne.s32.totalorder %s96, %s110
      %p112 = scmp.eq.s32.totalorder %s23, 0
      %p113 = por %p111, %p112
      %s115 = sadd.s32 %s114, 1
      %p118 = scmp.eq.s32.totalorder %s17, 1
      %p119 = scmp.ne.s32.totalorder %s114, %s116
      %p120 = scmp.eq.s32.totalorder %s17, 0
      %p121 = por %p119, %p120
      %p122 = scmp.ne.s32.totalorder %s114, %s116
      %p123 = scmp.eq.s32.totalorder %s22, 1
      %p124 = por %p122, %p123
      %p125 = scmp.ne.s32.totalorder %s116, %s117
      %p126 = scmp.eq.s32.totalorder %s22, 0
      %p127 = por %p125, %p126
      %p128 = scmp.ne.s32.totalorder %s116, %s117
      %p129 = scmp.eq.s32.totalorder %s23, 1
      %p130 = por %p128, %p129
      %p132 = scmp.ne.s32.totalorder %s117, %s131
      %p133 = scmp.eq.s32.totalorder %s23, 0
      %p134 = por %p132, %p133
      %s136 = sadd.s32 %s135, 1
      %p139 = scmp.eq.s32.totalorder %s17, 1
      %p140 = scmp.ne.s32.totalorder %s135, %s137
      %p141 = scmp.eq.s32.totalorder %s17, 0
      %p142 = por %p140, %p141
      %p143 = scmp.ne.s32.totalorder %s135, %s137
      %p144 = scmp.eq.s32.totalorder %s22, 1
      %p145 = por %p143, %p144
      %p146 = scmp.ne.s32.totalorder %s137, %s138
      %p147 = scmp.eq.s32.totalorder %s22, 0
      %p148 = por %p146, %p147
      %p149 = scmp.ne.s32.totalorder %s137, %s138
      %p150 = scmp.eq.s32.totalorder %s23, 1
      %p151 = por %p149, %p150
      %p153 = scmp.ne.s32.totalorder %s138, %s152
      %p154 = scmp.eq.s32.totalorder %s23, 0
      %p155 = por %p153, %p154
      %s157 = sadd.s32 %s156, 1
      %p160 = scmp.eq.s32.totalorder %s17, 1
      %p161 = scmp.ne.s32.totalorder %s156, %s158
      %p162 = scmp.eq.s32.totalorder %s17, 0
      %p163 = por %p161, %p162
      %p164 = scmp.ne.s32.totalorder %s156, %s158
      %p165 = scmp.eq.s32.totalorder %s22, 1
      %p166 = por %p164, %p165
      %p167 = scmp.ne.s32.totalorder %s158, %s159
      %p168 = scmp.eq.s32.totalorder %s22, 0
      %p169 = por %p167, %p168
      %p170 = scmp.ne.s32.totalorder %s158, %s159
      %p171 = scmp.eq.s32.totalorder %s23, 1
      %p172 = por %p170, %p171
      %p174 = scmp.ne.s32.totalorder %s159, %s173
      %p175 = scmp.eq.s32.totalorder %s23, 0
      %p176 = por %p174, %p175
      %s178 = sadd.s32 %s177, 1
      %p181 = scmp.eq.s32.totalorder %s17, 1
      %p182 = scmp.ne.s32.totalorder %s177, %s179
      %p183 = scmp.eq.s32.totalorder %s17, 0
      %p184 = por %p182, %p183
      %p185 = scmp.ne.s32.totalorder %s177, %s179
      %p186 = scmp.eq.s32.totalorder %s22, 1
      %p187 = por %p185, %p186
      %p188 = scmp.ne.s32.totalorder %s179, %s180
      %p189 = scmp.eq.s32.totalorder %s22, 0
      %p190 = por %p188, %p189
      %p191 = scmp.ne.s32.totalorder %s179, %s180
      %p192 = scmp.eq.s32.totalorder %s23, 1
      %p193 = por %p191, %p192
      %p195 = scmp.ne.s32.totalorder %s180, %s194
      %p196 = scmp.eq.s32.totalorder %s23, 0
      %p197 = por %p195, %p196
      %s198 = ssub.s32 %s17, %s24
      %p199 = scmp.eq.s32.totalorder %s198, 0
      %s201 = sadd.s32 %s200, 1
      %s202 = scalar_select %p199, %s200, %s201
      %p205 = pneg %p199
      %p206 = scmp.eq.s32.totalorder %s17, 1
      %p207 = por %p205, %p206
      %p208 = scmp.ne.s32.totalorder %s200, %s203
      %p209 = scmp.eq.s32.totalorder %s17, 0
      %p210 = por %p208, %p209
      %p211 = scmp.ne.s32.totalorder %s200, %s203
      %p212 = scmp.eq.s32.totalorder %s22, 1
      %p213 = por %p211, %p212
      %p214 = scmp.ne.s32.totalorder %s203, %s204
      %p215 = scmp.eq.s32.totalorder %s22, 0
      %p216 = por %p214, %p215
      %p217 = scmp.ne.s32.totalorder %s203, %s204
      %p218 = scmp.eq.s32.totalorder %s23, 1
      %p219 = por %p217, %p218
      %p221 = scmp.ne.s32.totalorder %s204, %s220
      %p222 = scmp.eq.s32.totalorder %s23, 0
      %p223 = por %p221, %p222
      %p224 = scmp.le.s32.totalorder 1, %s17
      %p225 = scmp.lt.s32.totalorder %s17, 3
      %p226 = pnand %p224, %p225
      %p227 = pneg %p226
      // Predicated region
      $region9: #{tpu_custom_call.1} parent=5 // pred_check
        _
      $region10: #{tpu_custom_call.1} parent=5 // pred_check_branch
        %229 = sbr.rel (%p226) target = $region12
      $region11: #{tpu_custom_call.1} parent=5 // pred_region
        %s230 = ssub.s32 %s17, 1
        // Predicated region
        $region13: #{tpu_custom_call.1} parent=11 // pred_check
          %p231 = pneg %p64
        $region14: #{tpu_custom_call.1} parent=11 // pred_check_branch
          %233 = sbr.rel (%p231) target = $region16
        $region15: #{tpu_custom_call.1} parent=11 // pred_region
          _
        $region16: #{tpu_custom_call.1} parent=11 // pred_fallthru
          _
        // Predicated region
        $region17: #{tpu_custom_call.1} parent=11 // pred_check
          %p234 = pneg %p85
        $region18: #{tpu_custom_call.1} parent=11 // pred_check_branch
          %236 = sbr.rel (%p234) target = $region20
        $region19: #{tpu_custom_call.1} parent=11 // pred_region
          _
        $region20: #{tpu_custom_call.1} parent=11 // pred_fallthru
          _
        // Predicated region
        $region21: #{tpu_custom_call.1} parent=11 // pred_check
          %p237 = pneg %p106
        $region22: #{tpu_custom_call.1} parent=11 // pred_check_branch
          %239 = sbr.rel (%p237) target = $region24
        $region23: #{tpu_custom_call.1} parent=11 // pred_region
          _
        $region24: #{tpu_custom_call.1} parent=11 // pred_fallthru
          _
        // Predicated region
        $region25: #{tpu_custom_call.1} parent=11 // pred_check
          %p240 = pneg %p127
        $region26: #{tpu_custom_call.1} parent=11 // pred_check_branch
          %242 = sbr.rel (%p240) target = $region28
        $region27: #{tpu_custom_call.1} parent=11 // pred_region
          _
        $region28: #{tpu_custom_call.1} parent=11 // pred_fallthru
          _
        // Predicated region
        $region29: #{tpu_custom_call.1} parent=11 // pred_check
          %p243 = pneg %p148
        $region30: #{tpu_custom_call.1} parent=11 // pred_check_branch
          %245 = sbr.rel (%p243) target = $region32
        $region31: #{tpu_custom_call.1} parent=11 // pred_region
          _
        $region32: #{tpu_custom_call.1} parent=11 // pred_fallthru
          _
        // Predicated region
        $region33: #{tpu_custom_call.1} parent=11 // pred_check
          %p246 = pneg %p169
        $region34: #{tpu_custom_call.1} parent=11 // pred_check_branch
          %248 = sbr.rel (%p246) target = $region36
        $region35: #{tpu_custom_call.1} parent=11 // pred_region
          _
        $region36: #{tpu_custom_call.1} parent=11 // pred_fallthru
          _
        // Predicated region
        $region37: #{tpu_custom_call.1} parent=11 // pred_check
          %p249 = pneg %p190
        $region38: #{tpu_custom_call.1} parent=11 // pred_check_branch
          %251 = sbr.rel (%p249) target = $region40
        $region39: #{tpu_custom_call.1} parent=11 // pred_region
          _
        $region40: #{tpu_custom_call.1} parent=11 // pred_fallthru
          _
      $region12: #{tpu_custom_call.1} parent=5 // pred_fallthru
        _
      %p252 = scmp.lt.s32.totalorder %s17, 2
      // Predicated region
      $region41: #{tpu_custom_call.1} parent=5 // pred_check
        %p253 = pneg %p252
      $region42: #{tpu_custom_call.1} parent=5 // pred_check_branch
        %255 = sbr.rel (%p253) target = $region44
      $region43: #{tpu_custom_call.1} parent=5 // pred_region
        // Predicated region
        $region45: #{tpu_custom_call.1} parent=43 // pred_check
          %p256 = pneg %p37
        $region46: #{tpu_custom_call.1} parent=43 // pred_check_branch
          %258 = sbr.rel (%p256) target = $region48
        $region47: #{tpu_custom_call.1} parent=43 // pred_region
          %p259 = scmp.lt.s32.totalorder %s17, 1
          %s260 = scalar_select %p259, %s17, 1
          %s261 = smul.addr %s260, 8
          %s262 = scalar_lea.vmem %s0, %s261
        $region48: #{tpu_custom_call.1} parent=43 // pred_fallthru
          _
      $region44: #{tpu_custom_call.1} parent=5 // pred_fallthru
        _
      %p263 = scmp.le.s32.totalorder 1, %s17
      %p264 = scmp.lt.s32.totalorder %s17, 3
      %p265 = pnand %p263, %p264
      %p266 = pneg %p265
      // Predicated region
      $region49: #{tpu_custom_call.1} parent=5 // pred_check
        _
      $region50: #{tpu_custom_call.1} parent=5 // pred_check_branch
        %268 = sbr.rel (%p265) target = $region52
      $region51: #{tpu_custom_call.1} parent=5 // pred_region
        %s269 = ssub.s32 %s17, 1
        %p270 = scmp.lt.s32.totalorder %s22, 1
        %s271 = scalar_select %p270, %s22, 1
        %s272 = smul.addr %s271, 8
        %s273 = scalar_lea.vmem %s0, %s272
        %p274 = pneg %p43
        %p275 = pneg %p40
        %p276 = pneg %p64
        %p277 = pneg %p61
        %p278 = pneg %p85
        %p279 = pneg %p82
        %p280 = pneg %p106
        %p281 = pneg %p103
        %p282 = pneg %p127
        %p283 = pneg %p124
        %p284 = pneg %p148
        %p285 = pneg %p145
        %p286 = pneg %p169
        %p287 = pneg %p166
        %p288 = pneg %p190
        %p289 = pneg %p187
        %p290 = pneg %p216
        %p291 = pneg %p213
        %s292 = sand.u32 %s203, 1
        %s293 = scalar_lea.sflag [#allocation3], %s292
        %s294 = sand.u32 %s203, 1
        %s295 = smul.addr %s294, 8
        %s296 = scalar_lea.vmem [#allocation2], %s295
        %p297 = scmp.lt.s32.totalorder %s22, 1
        %s298 = scalar_select %p297, %s22, 1
        %s299 = smul.addr %s298, 8
        %s300 = scalar_lea.vmem %s0, %s299
        %v302 = vld [vmem:[%s300] sm:$0xff]
        %v303 = vld [vmem:[%s7] sm:$0xff]
        %vm304 = vcmask 261120
        %v305 = vsel %vm304, %v302, 0.0
        %306 = vadd.xlane.f32.xlu0 %v305
        %v307 = vpop.xlane.xlu0 %306
        %v308 = vrcp.pop 32.0
        %v309 = vmul.f32 %v307, %v308
        %v310 = vsub.f32 %v302, %v309
        %v311 = vmul.f32 %v310, %v310
        %v312 = vsel %vm304, %v311, 0.0
        %313 = vadd.xlane.f32.xlu0 %v312
        %v314 = vpop.xlane.xlu0 %313
        %v315 = vmul.f32 %v314, %v308
        %v316 = vadd.f32 %v315, 1e-05
        %v317 = vrsqrt.pop %v316
        %v318 = vmul.f32 %v310, %v317
        %v319 = vpack.c.bf16 %v318, %v318
        %v320 = vld [vmem:[%s2] sm:$0xff]
        %v321 = vld [vmem:[%s2 + $0x8] sm:$0xff]
        %v322 = vld [vmem:[%s2 + $0x10] sm:$0xff]
        %v323 = vld [vmem:[%s2 + $0x18] sm:$0xff]
        %v325 = vlaneseq
        %v326 = vshrl.u32 %v325, 7
        %v327 = vsub.s32 0, %v326
        %v328 = vrot.slane %v303, %v327
        %v329 = vlaneseq
        %v330 = vshrl.u32 %v329, 7
        %v331 = vsub.s32 4, %v330
        %v332 = vrot.slane %v303, %v331
        %v335 = vlaneseq
        %v336 = vshrl.u32 %v335, 7
        %v337 = vsub.s32 0, %v336
        %v338 = vrot.slane %v328, %v337
        %v339 = vlaneseq
        %v340 = vshrl.u32 %v339, 7
        %v341 = vsub.s32 0, %v340
        %v342 = vrot.slane %v332, %v341
        %v347 = vunpack.c.l.b16 %v320
        %v348 = vunpack.c.h.b16 %v320
        %v349 = vunpack.c.l.b16 %v321
        %v350 = vunpack.c.h.b16 %v321
        %v351 = vunpack.c.l.b16 %v322
        %v352 = vunpack.c.h.b16 %v322
        %v353 = vunpack.c.l.b16 %v323
        %v354 = vunpack.c.h.b16 %v323
        %v355 = vpack.c.b16 %v349, %v347
        %v356 = vpack.c.b16 %v350, %v348
        %v357 = vpack.c.b16 %v353, %v351
        %v358 = vpack.c.b16 %v354, %v352
        %v364 = vsel %vm304, %v319, 0
        %366 = vmatprep.subr.bf16.mxu0 %v356
        %367 = vmatpush1.bf16.msra.mxu0 %v355
        %368 = vmatprep.subr.bf16.mxu0 %v358
        %369 = vmatpush1.bf16.msra.mxu0 %v357
        %370 = vmatprep.subr.bf16.mxu0 0
        %371 = vmatpush1.bf16.msra.mxu0 0
        %372 = vmatprep.subr.bf16.mxu0 0
        %373 = vmatpush1.bf16.msra.mxu0 0
        %374 = vmatprep.subr.bf16.mxu0 0
        %375 = vmatpush1.bf16.msra.mxu0 0
        %376 = vmatprep.subr.bf16.mxu0 0
        %377 = vmatpush1.bf16.msra.mxu0 0
        %378 = vmatprep.subr.bf16.mxu0 0
        %379 = vmatpush1.bf16.msra.mxu0 0
        %380 = vmatprep.subr.bf16.mxu0 0
        %381 = vmatpush1.bf16.msra.mxu0 0
        %382 = vmatprep.subr.bf16.mxu0 0
        %383 = vmatpush1.bf16.msra.mxu0 0
        %384 = vmatprep.subr.bf16.mxu0 0
        %385 = vmatpush1.bf16.msra.mxu0 0
        %386 = vmatprep.subr.bf16.mxu0 0
        %387 = vmatpush1.bf16.msra.mxu0 0
        %388 = vmatprep.subr.bf16.mxu0 0
        %389 = vmatpush1.bf16.msra.mxu0 0
        %390 = vmatprep.subr.bf16.mxu0 0
        %391 = vmatpush1.bf16.msra.mxu0 0
        %392 = vmatprep.subr.bf16.mxu0 0
        %393 = vmatpush1.bf16.msra.mxu0 0
        %394 = vmatprep.subr.bf16.mxu0 0
        %395 = vmatpush1.bf16.msra.mxu0 0
        %396 = vmatprep.subr.bf16.mxu0 0
        %397 = vmatpush1.bf16.msra.mxu0 0
        %398 = vmatprep.mubr.bf16.mxu0 0
        %399 = vmatmul.mubr.bf16.gmra.mrb[0].mxu0 %v364
        %v400 = vpop.f32.mrb[0].mxu0
        %v401 = vadd.f32 %v338, %v400
        %v402 = vpop.f32.mrb[0].mxu0
        %v403 = vadd.f32 %v342, %v402
        %v404 = vpop.f32.mrb[0].mxu0
        %v405 = vpop.f32.mrb[0].mxu0
        %406 = vdwg.mxu0
        %v407 = vld [vmem:[%s1] sm:$0xff]
        %s408 = scalar_lea.vmem %s1, 8
        %v409 = vld [vmem:[%s408] sm:$0xff]
        %v410 = vmul.f32 %v401, %v407
        %412 = vrot.lane.b32.xlu0 %v409, 32
        %v413 = vpop.permute.xlu0 %412
        %v415 = vmul.f32 %v401, %v413
        %417 = vrot.lane.b32.xlu0 %v415, 96
        %v418 = vpop.permute.xlu0 %417
        %v420 = vadd.f32 %v410, %v418
        %422 = vrot.lane.b32.xlu0 %v407, 64
        %v423 = vpop.permute.xlu0 %422
        %v425 = vmul.f32 %v401, %v423
        %426 = vrot.lane.b32.xlu0 %v409, 96
        %v427 = vpop.permute.xlu0 %426
        %v429 = vmul.f32 %v401, %v427
        %431 = vrot.lane.b32.xlu0 %v429, 96
        %v432 = vpop.permute.xlu0 %431
        %v434 = vadd.f32 %v425, %v432
        %v435 = vpack.c.bf16 %v420, %v420
        %v436 = vpack.c.bf16 %v434, %v434
        %v437 = vpack.c.bf16 %v403, %v403
        %439 = vrot.lane.b32.xlu0 %v436, 64
        %v440 = vpop.permute.xlu0 %439
        %vm441 = vcmask 64512
        %v443 = vsel %vm441, %v435, 0
        %v446 = vsel %vm441, %v440, 0
        %448 = vmatprep.subr.bf16.mxu0 0
        %449 = vmatpush1.bf16.xpose.msra.mxu0 %v446
        %450 = vmatprep.subr.bf16.mxu0 0
        %451 = vmatpush1.bf16.xpose.msra.mxu0 0
        %452 = vmatprep.subr.bf16.mxu0 0
        %453 = vmatpush1.bf16.xpose.msra.mxu0 0
        %454 = vmatprep.subr.bf16.mxu0 0
        %455 = vmatpush1.bf16.xpose.msra.mxu0 0
        %456 = vmatprep.subr.bf16.mxu0 0
        %457 = vmatpush1.bf16.xpose.msra.mxu0 0
        %458 = vmatprep.subr.bf16.mxu0 0
        %459 = vmatpush1.bf16.xpose.msra.mxu0 0
        %460 = vmatprep.subr.bf16.mxu0 0
        %461 = vmatpush1.bf16.xpose.msra.mxu0 0
        %462 = vmatprep.subr.bf16.mxu0 0
        %463 = vmatpush1.bf16.xpose.msra.mxu0 0
        %464 = vmatprep.subr.bf16.mxu0 0
        %465 = vmatpush1.bf16.xpose.msra.mxu0 0
        %466 = vmatprep.subr.bf16.mxu0 0
        %467 = vmatpush1.bf16.xpose.msra.mxu0 0
        %468 = vmatprep.subr.bf16.mxu0 0
        %469 = vmatpush1.bf16.xpose.msra.mxu0 0
        %470 = vmatprep.subr.bf16.mxu0 0
        %471 = vmatpush1.bf16.xpose.msra.mxu0 0
        %472 = vmatprep.subr.bf16.mxu0 0
        %473 = vmatpush1.bf16.xpose.msra.mxu0 0
        %474 = vmatprep.subr.bf16.mxu0 0
        %475 = vmatpush1.bf16.xpose.msra.mxu0 0
        %476 = vmatprep.subr.bf16.mxu0 0
        %477 = vmatpush1.bf16.xpose.msra.mxu0 0
        %478 = vmatprep.subr.bf16.mxu0 0
        %479 = vmatpush1.bf16.xpose.msra.mxu0 0
        %480 = vmatprep.mubr.bf16.mxu0 0
        %481 = vmatmul.mubr.bf16.gmra.mrb[0].mxu0 %v443
        %v482 = vpop.f32.mrb[0].mxu0
        %v483 = vadd.f32 0.0, %v482
        %v484 = vpop.f32.mrb[0].mxu0
        %v485 = vpop.f32.mrb[0].mxu0
        %v486 = vpop.f32.mrb[0].mxu0
        %487 = vdwg.mxu0
        %v488 = vsel %vm441, %v483, -inf
        %489 = vmax.xlane.f32.xlu0 %v488
        %v490 = vpop.xlane.xlu0 %489
        %v491 = vsub.f32 %v483, %v490
        %v492 = vmul.f32 %v491, 1.442695
        %v493 = vpow.pop %v492
        %v494 = vsel %vm441, %v493, 0.0
        %495 = vadd.xlane.f32.xlu0 %v494
        %v496 = vpop.xlane.xlu0 %495
        %v497 = vrcp.pop %v496
        %v498 = vmul.f32 %v493, %v497
        %v499 = vpack.c.bf16 %v498, %v498
        %v501 = vsel %vm441, %v499, 0
        %vm503 = vcmask 1043456
        %v505 = vsel %vm503, %v437, 0
        %507 = vmatprep.subr.bf16.mxu0 0
        %508 = vmatpush1.bf16.msra.mxu0 %v505
        %509 = vmatprep.subr.bf16.mxu0 0
        %510 = vmatpush1.bf16.msra.mxu0 0
        %511 = vmatprep.subr.bf16.mxu0 0
        %512 = vmatpush1.bf16.msra.mxu0 0
        %513 = vmatprep.subr.bf16.mxu0 0
        %514 = vmatpush1.bf16.msra.mxu0 0
        %515 = vmatprep.subr.bf16.mxu0 0
        %516 = vmatpush1.bf16.msra.mxu0 0
        %517 = vmatprep.subr.bf16.mxu0 0
        %518 = vmatpush1.bf16.msra.mxu0 0
        %519 = vmatprep.subr.bf16.mxu0 0
        %520 = vmatpush1.bf16.msra.mxu0 0
        %521 = vmatprep.subr.bf16.mxu0 0
        %522 = vmatpush1.bf16.msra.mxu0 0
        %523 = vmatprep.subr.bf16.mxu0 0
        %524 = vmatpush1.bf16.msra.mxu0 0
        %525 = vmatprep.subr.bf16.mxu0 0
        %526 = vmatpush1.bf16.msra.mxu0 0
        %527 = vmatprep.subr.bf16.mxu0 0
        %528 = vmatpush1.bf16.msra.mxu0 0
        %529 = vmatprep.subr.bf16.mxu0 0
        %530 = vmatpush1.bf16.msra.mxu0 0
        %531 = vmatprep.subr.bf16.mxu0 0
        %532 = vmatpush1.bf16.msra.mxu0 0
        %533 = vmatprep.subr.bf16.mxu0 0
        %534 = vmatpush1.bf16.msra.mxu0 0
        %535 = vmatprep.subr.bf16.mxu0 0
        %536 = vmatpush1.bf16.msra.mxu0 0
        %537 = vmatprep.subr.bf16.mxu0 0
        %538 = vmatpush1.bf16.msra.mxu0 0
        %539 = vmatprep.mubr.bf16.mxu0 0
        %540 = vmatmul.mubr.bf16.gmra.mrb[0].mxu0 %v501
        %v541 = vpop.f32.mrb[0].mxu0
        %v542 = vadd.f32 0.0, %v541
        %v543 = vpop.f32.mrb[0].mxu0
        %v544 = vpop.f32.mrb[0].mxu0
        %v545 = vpop.f32.mrb[0].mxu0
        %546 = vdwg.mxu0
        %v547 = vpack.c.bf16 %v542, %v542
        %v548 = vld [vmem:[%s3] sm:$0xf]
        %v550 = vsel %vm441, %v547, 0
        %v553 = vsel %vm503, %v548, 0
        %555 = vmatprep.subr.bf16.mxu0 0
        %556 = vmatpush1.bf16.msra.mxu0 %v553
        %557 = vmatprep.subr.bf16.mxu0 0
        %558 = vmatpush1.bf16.msra.mxu0 0
        %559 = vmatprep.subr.bf16.mxu0 0
        %560 = vmatpush1.bf16.msra.mxu0 0
        %561 = vmatprep.subr.bf16.mxu0 0
        %562 = vmatpush1.bf16.msra.mxu0 0
        %563 = vmatprep.subr.bf16.mxu0 0
        %564 = vmatpush1.bf16.msra.mxu0 0
        %565 = vmatprep.subr.bf16.mxu0 0
        %566 = vmatpush1.bf16.msra.mxu0 0
        %567 = vmatprep.subr.bf16.mxu0 0
        %568 = vmatpush1.bf16.msra.mxu0 0
        %569 = vmatprep.subr.bf16.mxu0 0
        %570 = vmatpush1.bf16.msra.mxu0 0
        %571 = vmatprep.subr.bf16.mxu0 0
        %572 = vmatpush1.bf16.msra.mxu0 0
        %573 = vmatprep.subr.bf16.mxu0 0
        %574 = vmatpush1.bf16.msra.mxu0 0
        %575 = vmatprep.subr.bf16.mxu0 0
        %576 = vmatpush1.bf16.msra.mxu0 0
        %577 = vmatprep.subr.bf16.mxu0 0
        %578 = vmatpush1.bf16.msra.mxu0 0
        %579 = vmatprep.subr.bf16.mxu0 0
        %580 = vmatpush1.bf16.msra.mxu0 0
        %581 = vmatprep.subr.bf16.mxu0 0
        %582 = vmatpush1.bf16.msra.mxu0 0
        %583 = vmatprep.subr.bf16.mxu0 0
        %584 = vmatpush1.bf16.msra.mxu0 0
        %585 = vmatprep.subr.bf16.mxu0 0
        %586 = vmatpush1.bf16.msra.mxu0 0
        %587 = vmatprep.mubr.bf16.mxu0 0
        %588 = vmatmul.mubr.bf16.gmra.mrb[0].mxu0 %v550
        %v589 = vpop.f32.mrb[0].mxu0
        %v590 = vadd.f32 0.0, %v589
        %v591 = vpop.f32.mrb[0].mxu0
        %v592 = vpop.f32.mrb[0].mxu0
        %v593 = vpop.f32.mrb[0].mxu0
        %594 = vdwg.mxu0
        %v595 = vadd.f32 %v302, %v590
        %597 = vrot.lane.b32.xlu0 %v435, 120
        %v598 = vpop.permute.xlu0 %597
        %599 = vrot.lane.b32.xlu0 %v436, 56
        %v600 = vpop.permute.xlu0 %599
        %v602 = vsel %vm441, %v598, 0
        %v605 = vsel %vm441, %v600, 0
        %607 = vmatprep.subr.bf16.mxu0 0
        %608 = vmatpush1.bf16.xpose.msra.mxu0 %v605
        %609 = vmatprep.subr.bf16.mxu0 0
        %610 = vmatpush1.bf16.xpose.msra.mxu0 0
        %611 = vmatprep.subr.bf16.mxu0 0
        %612 = vmatpush1.bf16.xpose.msra.mxu0 0
        %613 = vmatprep.subr.bf16.mxu0 0
        %614 = vmatpush1.bf16.xpose.msra.mxu0 0
        %615 = vmatprep.subr.bf16.mxu0 0
        %616 = vmatpush1.bf16.xpose.msra.mxu0 0
        %617 = vmatprep.subr.bf16.mxu0 0
        %618 = vmatpush1.bf16.xpose.msra.mxu0 0
        %619 = vmatprep.subr.bf16.mxu0 0
        %620 = vmatpush1.bf16.xpose.msra.mxu0 0
        %621 = vmatprep.subr.bf16.mxu0 0
        %622 = vmatpush1.bf16.xpose.msra.mxu0 0
        %623 = vmatprep.subr.bf16.mxu0 0
        %624 = vmatpush1.bf16.xpose.msra.mxu0 0
        %625 = vmatprep.subr.bf16.mxu0 0
        %626 = vmatpush1.bf16.xpose.msra.mxu0 0
        %627 = vmatprep.subr.bf16.mxu0 0
        %628 = vmatpush1.bf16.xpose.msra.mxu0 0
        %629 = vmatprep.subr.bf16.mxu0 0
        %630 = vmatpush1.bf16.xpose.msra.mxu0 0
        %631 = vmatprep.subr.bf16.mxu0 0
        %632 = vmatpush1.bf16.xpose.msra.mxu0 0
        %633 = vmatprep.subr.bf16.mxu0 0
        %634 = vmatpush1.bf16.xpose.msra.mxu0 0
        %635 = vmatprep.subr.bf16.mxu0 0
        %636 = vmatpush1.bf16.xpose.msra.mxu0 0
        %637 = vmatprep.subr.bf16.mxu0 0
        %638 = vmatpush1.bf16.xpose.msra.mxu0 0
        %639 = vmatprep.mubr.bf16.mxu0 0
        %640 = vmatmul.mubr.bf16.gmra.mrb[0].mxu0 %v602
        %v641 = vpop.f32.mrb[0].mxu0
        %v642 = vadd.f32 0.0, %v641
        %v643 = vpop.f32.mrb[0].mxu0
        %v644 = vpop.f32.mrb[0].mxu0
        %v645 = vpop.f32.mrb[0].mxu0
        %646 = vdwg.mxu0
        %v647 = vsel %vm441, %v642, -inf
        %648 = vmax.xlane.f32.xlu0 %v647
        %v649 = vpop.xlane.xlu0 %648
        %v650 = vsub.f32 %v642, %v649
        %v651 = vmul.f32 %v650, 1.442695
        %v652 = vpow.pop %v651
        %v653 = vsel %vm441, %v652, 0.0
        %654 = vadd.xlane.f32.xlu0 %v653
        %v655 = vpop.xlane.xlu0 %654
        %v656 = vrcp.pop %v655
        %v657 = vmul.f32 %v652, %v656
        %v658 = vpack.c.bf16 %v657, %v657
        %660 = vrot.lane.b32.xlu0 %v437, 120
        %v661 = vpop.permute.xlu0 %660
        %v663 = vsel %vm441, %v658, 0
        %v666 = vsel %vm503, %v661, 0
        %668 = vmatprep.subr.bf16.mxu0 0
        %669 = vmatpush1.bf16.msra.mxu0 %v666
        %670 = vmatprep.subr.bf16.mxu0 0
        %671 = vmatpush1.bf16.msra.mxu0 0
        %672 = vmatprep.subr.bf16.mxu0 0
        %673 = vmatpush1.bf16.msra.mxu0 0
        %674 = vmatprep.subr.bf16.mxu0 0
        %675 = vmatpush1.bf16.msra.mxu0 0
        %676 = vmatprep.subr.bf16.mxu0 0
        %677 = vmatpush1.bf16.msra.mxu0 0
        %678 = vmatprep.subr.bf16.mxu0 0
        %679 = vmatpush1.bf16.msra.mxu0 0
        %680 = vmatprep.subr.bf16.mxu0 0
        %681 = vmatpush1.bf16.msra.mxu0 0
        %682 = vmatprep.subr.bf16.mxu0 0
        %683 = vmatpush1.bf16.msra.mxu0 0
        %684 = vmatprep.subr.bf16.mxu0 0
        %685 = vmatpush1.bf16.msra.mxu0 0
        %686 = vmatprep.subr.bf16.mxu0 0
        %687 = vmatpush1.bf16.msra.mxu0 0
        %688 = vmatprep.subr.bf16.mxu0 0
        %689 = vmatpush1.bf16.msra.mxu0 0
        %690 = vmatprep.subr.bf16.mxu0 0
        %691 = vmatpush1.bf16.msra.mxu0 0
        %692 = vmatprep.subr.bf16.mxu0 0
        %693 = vmatpush1.bf16.msra.mxu0 0
        %694 = vmatprep.subr.bf16.mxu0 0
        %695 = vmatpush1.bf16.msra.mxu0 0
        %696 = vmatprep.subr.bf16.mxu0 0
        %697 = vmatpush1.bf16.msra.mxu0 0
        %698 = vmatprep.subr.bf16.mxu0 0
        %699 = vmatpush1.bf16.msra.mxu0 0
        %700 = vmatprep.mubr.bf16.mxu0 0
        %701 = vmatmul.mubr.bf16.gmra.mrb[0].mxu0 %v663
        %v702 = vpop.f32.mrb[0].mxu0
        %v703 = vadd.f32 0.0, %v702
        %v704 = vpop.f32.mrb[0].mxu0
        %v705 = vpop.f32.mrb[0].mxu0
        %v706 = vpop.f32.mrb[0].mxu0
        %707 = vdwg.mxu0
        %v708 = vpack.c.bf16 %v703, %v703
        %s709 = scalar_lea.vmem %s3, 4
        %v710 = vld [vmem:[%s709] sm:$0xf]
        %v712 = vsel %vm441, %v708, 0
        %v715 = vsel %vm503, %v710, 0
        %717 = vmatprep.subr.bf16.mxu0 0
        %718 = vmatpush1.bf16.msra.mxu0 %v715
        %719 = vmatprep.subr.bf16.mxu0 0
        %720 = vmatpush1.bf16.msra.mxu0 0
        %721 = vmatprep.subr.bf16.mxu0 0
        %722 = vmatpush1.bf16.msra.mxu0 0
        %723 = vmatprep.subr.bf16.mxu0 0
        %724 = vmatpush1.bf16.msra.mxu0 0
        %725 = vmatprep.subr.bf16.mxu0 0
        %726 = vmatpush1.bf16.msra.mxu0 0
        %727 = vmatprep.subr.bf16.mxu0 0
        %728 = vmatpush1.bf16.msra.mxu0 0
        %729 = vmatprep.subr.bf16.mxu0 0
        %730 = vmatpush1.bf16.msra.mxu0 0
        %731 = vmatprep.subr.bf16.mxu0 0
        %732 = vmatpush1.bf16.msra.mxu0 0
        %733 = vmatprep.subr.bf16.mxu0 0
        %734 = vmatpush1.bf16.msra.mxu0 0
        %735 = vmatprep.subr.bf16.mxu0 0
        %736 = vmatpush1.bf16.msra.mxu0 0
        %737 = vmatprep.subr.bf16.mxu0 0
        %738 = vmatpush1.bf16.msra.mxu0 0
        %739 = vmatprep.subr.bf16.mxu0 0
        %740 = vmatpush1.bf16.msra.mxu0 0
        %741 = vmatprep.subr.bf16.mxu0 0
        %742 = vmatpush1.bf16.msra.mxu0 0
        %743 = vmatprep.subr.bf16.mxu0 0
        %744 = vmatpush1.bf16.msra.mxu0 0
        %745 = vmatprep.subr.bf16.mxu0 0
        %746 = vmatpush1.bf16.msra.mxu0 0
        %747 = vmatprep.subr.bf16.mxu0 0
        %748 = vmatpush1.bf16.msra.mxu0 0
        %749 = vmatprep.mubr.bf16.mxu0 0
        %750 = vmatmul.mubr.bf16.gmra.mrb[0].mxu0 %v712
        %v751 = vpop.f32.mrb[0].mxu0
        %v752 = vadd.f32 0.0, %v751
        %v753 = vpop.f32.mrb[0].mxu0
        %v754 = vpop.f32.mrb[0].mxu0
        %v755 = vpop.f32.mrb[0].mxu0
        %756 = vdwg.mxu0
        %v757 = vadd.f32 %v595, %v752
        %758 = vrot.lane.b32.xlu0 %v435, 112
        %v759 = vpop.permute.xlu0 %758
        %760 = vrot.lane.b32.xlu0 %v436, 48
        %v761 = vpop.permute.xlu0 %760
        %v763 = vsel %vm441, %v759, 0
        %v766 = vsel %vm441, %v761, 0
        %768 = vmatprep.subr.bf16.mxu0 0
        %769 = vmatpush1.bf16.xpose.msra.mxu0 %v766
        %770 = vmatprep.subr.bf16.mxu0 0
        %771 = vmatpush1.bf16.xpose.msra.mxu0 0
        %772 = vmatprep.subr.bf16.mxu0 0
        %773 = vmatpush1.bf16.xpose.msra.mxu0 0
        %774 = vmatprep.subr.bf16.mxu0 0
        %775 = vmatpush1.bf16.xpose.msra.mxu0 0
        %776 = vmatprep.subr.bf16.mxu0 0
        %777 = vmatpush1.bf16.xpose.msra.mxu0 0
        %778 = vmatprep.subr.bf16.mxu0 0
        %779 = vmatpush1.bf16.xpose.msra.mxu0 0
        %780 = vmatprep.subr.bf16.mxu0 0
        %781 = vmatpush1.bf16.xpose.msra.mxu0 0
        %782 = vmatprep.subr.bf16.mxu0 0
        %783 = vmatpush1.bf16.xpose.msra.mxu0 0
        %784 = vmatprep.subr.bf16.mxu0 0
        %785 = vmatpush1.bf16.xpose.msra.mxu0 0
        %786 = vmatprep.subr.bf16.mxu0 0
        %787 = vmatpush1.bf16.xpose.msra.mxu0 0
        %788 = vmatprep.subr.bf16.mxu0 0
        %789 = vmatpush1.bf16.xpose.msra.mxu0 0
        %790 = vmatprep.subr.bf16.mxu0 0
        %791 = vmatpush1.bf16.xpose.msra.mxu0 0
        %792 = vmatprep.subr.bf16.mxu0 0
        %793 = vmatpush1.bf16.xpose.msra.mxu0 0
        %794 = vmatprep.subr.bf16.mxu0 0
        %795 = vmatpush1.bf16.xpose.msra.mxu0 0
        %796 = vmatprep.subr.bf16.mxu0 0
        %797 = vmatpush1.bf16.xpose.msra.mxu0 0
        %798 = vmatprep.subr.bf16.mxu0 0
        %799 = vmatpush1.bf16.xpose.msra.mxu0 0
        %800 = vmatprep.mubr.bf16.mxu0 0
        %801 = vmatmul.mubr.bf16.gmra.mrb[0].mxu0 %v763
        %v802 = vpop.f32.mrb[0].mxu0
        %v803 = vadd.f32 0.0, %v802
        %v804 = vpop.f32.mrb[0].mxu0
        %v805 = vpop.f32.mrb[0].mxu0
        %v806 = vpop.f32.mrb[0].mxu0
        %807 = vdwg.mxu0
        %v808 = vsel %vm441, %v803, -inf
        %809 = vmax.xlane.f32.xlu0 %v808
        %v810 = vpop.xlane.xlu0 %809
        %v811 = vsub.f32 %v803, %v810
        %v812 = vmul.f32 %v811, 1.442695
        %v813 = vpow.pop %v812
        %v814 = vsel %vm441, %v813, 0.0
        %815 = vadd.xlane.f32.xlu0 %v814
        %v816 = vpop.xlane.xlu0 %815
        %v817 = vrcp.pop %v816
        %v818 = vmul.f32 %v813, %v817
        %v819 = vpack.c.bf16 %v818, %v818
        %820 = vrot.lane.b32.xlu0 %v437, 112
        %v821 = vpop.permute.xlu0 %820
        %v823 = vsel %vm441, %v819, 0
        %v826 = vsel %vm503, %v821, 0
        %828 = vmatprep.subr.bf16.mxu0 0
        %829 = vmatpush1.bf16.msra.mxu0 %v826
        %830 = vmatprep.subr.bf16.mxu0 0
        %831 = vmatpush1.bf16.msra.mxu0 0
        %832 = vmatprep.subr.bf16.mxu0 0
        %833 = vmatpush1.bf16.msra.mxu0 0
        %834 = vmatprep.subr.bf16.mxu0 0
        %835 = vmatpush1.bf16.msra.mxu0 0
        %836 = vmatprep.subr.bf16.mxu0 0
        %837 = vmatpush1.bf16.msra.mxu0 0
        %838 = vmatprep.subr.bf16.mxu0 0
        %839 = vmatpush1.bf16.msra.mxu0 0
        %840 = vmatprep.subr.bf16.mxu0 0
        %841 = vmatpush1.bf16.msra.mxu0 0
        %842 = vmatprep.subr.bf16.mxu0 0
        %843 = vmatpush1.bf16.msra.mxu0 0
        %844 = vmatprep.subr.bf16.mxu0 0
        %845 = vmatpush1.bf16.msra.mxu0 0
        %846 = vmatprep.subr.bf16.mxu0 0
        %847 = vmatpush1.bf16.msra.mxu0 0
        %848 = vmatprep.subr.bf16.mxu0 0
        %849 = vmatpush1.bf16.msra.mxu0 0
        %850 = vmatprep.subr.bf16.mxu0 0
        %851 = vmatpush1.bf16.msra.mxu0 0
        %852 = vmatprep.subr.bf16.mxu0 0
        %853 = vmatpush1.bf16.msra.mxu0 0
        %854 = vmatprep.subr.bf16.mxu0 0
        %855 = vmatpush1.bf16.msra.mxu0 0
        %856 = vmatprep.subr.bf16.mxu0 0
        %857 = vmatpush1.bf16.msra.mxu0 0
        %858 = vmatprep.subr.bf16.mxu0 0
        %859 = vmatpush1.bf16.msra.mxu0 0
        %860 = vmatprep.mubr.bf16.mxu0 0
        %861 = vmatmul.mubr.bf16.gmra.mrb[0].mxu0 %v823
        %v862 = vpop.f32.mrb[0].mxu0
        %v863 = vadd.f32 0.0, %v862
        %v864 = vpop.f32.mrb[0].mxu0
        %v865 = vpop.f32.mrb[0].mxu0
        %v866 = vpop.f32.mrb[0].mxu0
        %867 = vdwg.mxu0
        %v868 = vpack.c.bf16 %v863, %v863
        %s869 = scalar_lea.vmem %s3, 8
        %v870 = vld [vmem:[%s869] sm:$0xf]
        %v872 = vsel %vm441, %v868, 0
        %v875 = vsel %vm503, %v870, 0
        %877 = vmatprep.subr.bf16.mxu0 0
        %878 = vmatpush1.bf16.msra.mxu0 %v875
        %879 = vmatprep.subr.bf16.mxu0 0
        %880 = vmatpush1.bf16.msra.mxu0 0
        %881 = vmatprep.subr.bf16.mxu0 0
        %882 = vmatpush1.bf16.msra.mxu0 0
        %883 = vmatprep.subr.bf16.mxu0 0
        %884 = vmatpush1.bf16.msra.mxu0 0
        %885 = vmatprep.subr.bf16.mxu0 0
        %886 = vmatpush1.bf16.msra.mxu0 0
        %887 = vmatprep.subr.bf16.mxu0 0
        %888 = vmatpush1.bf16.msra.mxu0 0
        %889 = vmatprep.subr.bf16.mxu0 0
        %890 = vmatpush1.bf16.msra.mxu0 0
        %891 = vmatprep.subr.bf16.mxu0 0
        %892 = vmatpush1.bf16.msra.mxu0 0
        %893 = vmatprep.subr.bf16.mxu0 0
        %894 = vmatpush1.bf16.msra.mxu0 0
        %895 = vmatprep.subr.bf16.mxu0 0
        %896 = vmatpush1.bf16.msra.mxu0 0
        %897 = vmatprep.subr.bf16.mxu0 0
        %898 = vmatpush1.bf16.msra.mxu0 0
        %899 = vmatprep.subr.bf16.mxu0 0
        %900 = vmatpush1.bf16.msra.mxu0 0
        %901 = vmatprep.subr.bf16.mxu0 0
        %902 = vmatpush1.bf16.msra.mxu0 0
        %903 = vmatprep.subr.bf16.mxu0 0
        %904 = vmatpush1.bf16.msra.mxu0 0
        %905 = vmatprep.subr.bf16.mxu0 0
        %906 = vmatpush1.bf16.msra.mxu0 0
        %907 = vmatprep.subr.bf16.mxu0 0
        %908 = vmatpush1.bf16.msra.mxu0 0
        %909 = vmatprep.mubr.bf16.mxu0 0
        %910 = vmatmul.mubr.bf16.gmra.mrb[0].mxu0 %v872
        %v911 = vpop.f32.mrb[0].mxu0
        %v912 = vadd.f32 0.0, %v911
        %v913 = vpop.f32.mrb[0].mxu0
        %v914 = vpop.f32.mrb[0].mxu0
        %v915 = vpop.f32.mrb[0].mxu0
        %916 = vdwg.mxu0
        %v917 = vadd.f32 %v757, %v912
        %918 = vrot.lane.b32.xlu0 %v435, 104
        %v919 = vpop.permute.xlu0 %918
        %920 = vrot.lane.b32.xlu0 %v436, 40
        %v921 = vpop.permute.xlu0 %920
        %v923 = vsel %vm441, %v919, 0
        %v926 = vsel %vm441, %v921, 0
        %928 = vmatprep.subr.bf16.mxu0 0
        %929 = vmatpush1.bf16.xpose.msra.mxu0 %v926
        %930 = vmatprep.subr.bf16.mxu0 0
        %931 = vmatpush1.bf16.xpose.msra.mxu0 0
        %932 = vmatprep.subr.bf16.mxu0 0
        %933 = vmatpush1.bf16.xpose.msra.mxu0 0
        %934 = vmatprep.subr.bf16.mxu0 0
        %935 = vmatpush1.bf16.xpose.msra.mxu0 0
        %936 = vmatprep.subr.bf16.mxu0 0
        %937 = vmatpush1.bf16.xpose.msra.mxu0 0
        %938 = vmatprep.subr.bf16.mxu0 0
        %939 = vmatpush1.bf16.xpose.msra.mxu0 0
        %940 = vmatprep.subr.bf16.mxu0 0
        %941 = vmatpush1.bf16.xpose.msra.mxu0 0
        %942 = vmatprep.subr.bf16.mxu0 0
        %943 = vmatpush1.bf16.xpose.msra.mxu0 0
        %944 = vmatprep.subr.bf16.mxu0 0
        %945 = vmatpush1.bf16.xpose.msra.mxu0 0
        %946 = vmatprep.subr.bf16.mxu0 0
        %947 = vmatpush1.bf16.xpose.msra.mxu0 0
        %948 = vmatprep.subr.bf16.mxu0 0
        %949 = vmatpush1.bf16.xpose.msra.mxu0 0
        %950 = vmatprep.subr.bf16.mxu0 0
        %951 = vmatpush1.bf16.xpose.msra.mxu0 0
        %952 = vmatprep.subr.bf16.mxu0 0
        %953 = vmatpush1.bf16.xpose.msra.mxu0 0
        %954 = vmatprep.subr.bf16.mxu0 0
        %955 = vmatpush1.bf16.xpose.msra.mxu0 0
        %956 = vmatprep.subr.bf16.mxu0 0
        %957 = vmatpush1.bf16.xpose.msra.mxu0 0
        %958 = vmatprep.subr.bf16.mxu0 0
        %959 = vmatpush1.bf16.xpose.msra.mxu0 0
        %960 = vmatprep.mubr.bf16.mxu0 0
        %961 = vmatmul.mubr.bf16.gmra.mrb[0].mxu0 %v923
        %v962 = vpop.f32.mrb[0].mxu0
        %v963 = vadd.f32 0.0, %v962
        %v964 = vpop.f32.mrb[0].mxu0
        %v965 = vpop.f32.mrb[0].mxu0
        %v966 = vpop.f32.mrb[0].mxu0
        %967 = vdwg.mxu0
        %v968 = vsel %vm441, %v963, -inf
        %969 = vmax.xlane.f32.xlu0 %v968
        %v970 = vpop.xlane.xlu0 %969
        %v971 = vsub.f32 %v963, %v970
        %v972 = vmul.f32 %v971, 1.442695
        %v973 = vpow.pop %v972
        %v974 = vsel %vm441, %v973, 0.0
        %975 = vadd.xlane.f32.xlu0 %v974
        %v976 = vpop.xlane.xlu0 %975
        %v977 = vrcp.pop %v976
        %v978 = vmul.f32 %v973, %v977
        %v979 = vpack.c.bf16 %v978, %v978
        %980 = vrot.lane.b32.xlu0 %v437, 104
        %v981 = vpop.permute.xlu0 %980
        %v983 = vsel %vm441, %v979, 0
        %v986 = vsel %vm503, %v981, 0
        %988 = vmatprep.subr.bf16.mxu0 0
        %989 = vmatpush1.bf16.msra.mxu0 %v986
        %990 = vmatprep.subr.bf16.mxu0 0
        %991 = vmatpush1.bf16.msra.mxu0 0
        %992 = vmatprep.subr.bf16.mxu0 0
        %993 = vmatpush1.bf16.msra.mxu0 0
        %994 = vmatprep.subr.bf16.mxu0 0
        %995 = vmatpush1.bf16.msra.mxu0 0
        %996 = vmatprep.subr.bf16.mxu0 0
        %997 = vmatpush1.bf16.msra.mxu0 0
        %998 = vmatprep.subr.bf16.mxu0 0
        %999 = vmatpush1.bf16.msra.mxu0 0
        %1000 = vmatprep.subr.bf16.mxu0 0
        %1001 = vmatpush1.bf16.msra.mxu0 0
        %1002 = vmatprep.subr.bf16.mxu0 0
        %1003 = vmatpush1.bf16.msra.mxu0 0
        %1004 = vmatprep.subr.bf16.mxu0 0
        %1005 = vmatpush1.bf16.msra.mxu0 0
        %1006 = vmatprep.subr.bf16.mxu0 0
        %1007 = vmatpush1.bf16.msra.mxu0 0
        %1008 = vmatprep.subr.bf16.mxu0 0
        %1009 = vmatpush1.bf16.msra.mxu0 0
        %1010 = vmatprep.subr.bf16.mxu0 0
        %1011 = vmatpush1.bf16.msra.mxu0 0
        %1012 = vmatprep.subr.bf16.mxu0 0
        %1013 = vmatpush1.bf16.msra.mxu0 0
        %1014 = vmatprep.subr.bf16.mxu0 0
        %1015 = vmatpush1.bf16.msra.mxu0 0
        %1016 = vmatprep.subr.bf16.mxu0 0
        %1017 = vmatpush1.bf16.msra.mxu0 0
        %1018 = vmatprep.subr.bf16.mxu0 0
        %1019 = vmatpush1.bf16.msra.mxu0 0
        %1020 = vmatprep.mubr.bf16.mxu0 0
        %1021 = vmatmul.mubr.bf16.gmra.mrb[0].mxu0 %v983
        %v1022 = vpop.f32.mrb[0].mxu0
        %v1023 = vadd.f32 0.0, %v1022
        %v1024 = vpop.f32.mrb[0].mxu0
        %v1025 = vpop.f32.mrb[0].mxu0
        %v1026 = vpop.f32.mrb[0].mxu0
        %1027 = vdwg.mxu0
        %v1028 = vpack.c.bf16 %v1023, %v1023
        %s1029 = scalar_lea.vmem %s3, 12
        %v1030 = vld [vmem:[%s1029] sm:$0xf]
        %v1032 = vsel %vm441, %v1028, 0
        %v1035 = vsel %vm503, %v1030, 0
        %1037 = vmatprep.subr.bf16.mxu0 0
        %1038 = vmatpush1.bf16.msra.mxu0 %v1035
        %1039 = vmatprep.subr.bf16.mxu0 0
        %1040 = vmatpush1.bf16.msra.mxu0 0
        %1041 = vmatprep.subr.bf16.mxu0 0
        %1042 = vmatpush1.bf16.msra.mxu0 0
        %1043 = vmatprep.subr.bf16.mxu0 0
        %1044 = vmatpush1.bf16.msra.mxu0 0
        %1045 = vmatprep.subr.bf16.mxu0 0
        %1046 = vmatpush1.bf16.msra.mxu0 0
        %1047 = vmatprep.subr.bf16.mxu0 0
        %1048 = vmatpush1.bf16.msra.mxu0 0
        %1049 = vmatprep.subr.bf16.mxu0 0
        %1050 = vmatpush1.bf16.msra.mxu0 0
        %1051 = vmatprep.subr.bf16.mxu0 0
        %1052 = vmatpush1.bf16.msra.mxu0 0
        %1053 = vmatprep.subr.bf16.mxu0 0
        %1054 = vmatpush1.bf16.msra.mxu0 0
        %1055 = vmatprep.subr.bf16.mxu0 0
        %1056 = vmatpush1.bf16.msra.mxu0 0
        %1057 = vmatprep.subr.bf16.mxu0 0
        %1058 = vmatpush1.bf16.msra.mxu0 0
        %1059 = vmatprep.subr.bf16.mxu0 0
        %1060 = vmatpush1.bf16.msra.mxu0 0
        %1061 = vmatprep.subr.bf16.mxu0 0
        %1062 = vmatpush1.bf16.msra.mxu0 0
        %1063 = vmatprep.subr.bf16.mxu0 0
        %1064 = vmatpush1.bf16.msra.mxu0 0
        %1065 = vmatprep.subr.bf16.mxu0 0
        %1066 = vmatpush1.bf16.msra.mxu0 0
        %1067 = vmatprep.subr.bf16.mxu0 0
        %1068 = vmatpush1.bf16.msra.mxu0 0
        %1069 = vmatprep.mubr.bf16.mxu0 0
        %1070 = vmatmul.mubr.bf16.gmra.mrb[0].mxu0 %v1032
        %v1071 = vpop.f32.mrb[0].mxu0
        %v1072 = vadd.f32 0.0, %v1071
        %v1073 = vpop.f32.mrb[0].mxu0
        %v1074 = vpop.f32.mrb[0].mxu0
        %v1075 = vpop.f32.mrb[0].mxu0
        %1076 = vdwg.mxu0
        %v1077 = vadd.f32 %v917, %v1072
        %v1078 = vpack.c.bf16 %v1077, %v1077
        %v1079 = vld [vmem:[%s4] sm:$0xf]
        %v1080 = vld [vmem:[%s4 + $0x4] sm:$0xf]
        %v1081 = vld [vmem:[%s4 + $0x8] sm:$0xf]
        %v1082 = vld [vmem:[%s4 + $0xc] sm:$0xf]
        %v1083 = vlaneseq
        %v1084 = vshrl.u32 %v1083, 7
        %v1085 = vsub.s32 3, %v1084
        %v1086 = vrot.slane %v303, %v1085
        %v1091 = vunpack.c.l.b16 %v1079
        %v1092 = vunpack.c.l.b16 %v1080
        %v1093 = vunpack.c.l.b16 %v1081
        %v1094 = vunpack.c.l.b16 %v1082
        %v1095 = vpack.c.b16 %v1092, %v1091
        %v1096 = vpack.c.b16 %v1094, %v1093
        %v1100 = vsel %vm304, %v1078, 0
        %1102 = vmatprep.subr.bf16.mxu0 0
        %1103 = vmatpush1.bf16.msra.mxu0 %v1095
        %1104 = vmatprep.subr.bf16.mxu0 0
        %1105 = vmatpush1.bf16.msra.mxu0 %v1096
        %1106 = vmatprep.subr.bf16.mxu0 0
        %1107 = vmatpush1.bf16.msra.mxu0 0
        %1108 = vmatprep.subr.bf16.mxu0 0
        %1109 = vmatpush1.bf16.msra.mxu0 0
        %1110 = vmatprep.subr.bf16.mxu0 0
        %1111 = vmatpush1.bf16.msra.mxu0 0
        %1112 = vmatprep.subr.bf16.mxu0 0
        %1113 = vmatpush1.bf16.msra.mxu0 0
        %1114 = vmatprep.subr.bf16.mxu0 0
        %1115 = vmatpush1.bf16.msra.mxu0 0
        %1116 = vmatprep.subr.bf16.mxu0 0
        %1117 = vmatpush1.bf16.msra.mxu0 0
        %1118 = vmatprep.subr.bf16.mxu0 0
        %1119 = vmatpush1.bf16.msra.mxu0 0
        %1120 = vmatprep.subr.bf16.mxu0 0
        %1121 = vmatpush1.bf16.msra.mxu0 0
        %1122 = vmatprep.subr.bf16.mxu0 0
        %1123 = vmatpush1.bf16.msra.mxu0 0
        %1124 = vmatprep.subr.bf16.mxu0 0
        %1125 = vmatpush1.bf16.msra.mxu0 0
        %1126 = vmatprep.subr.bf16.mxu0 0
        %1127 = vmatpush1.bf16.msra.mxu0 0
        %1128 = vmatprep.subr.bf16.mxu0 0
        %1129 = vmatpush1.bf16.msra.mxu0 0
        %1130 = vmatprep.subr.bf16.mxu0 0
        %1131 = vmatpush1.bf16.msra.mxu0 0
        %1132 = vmatprep.subr.bf16.mxu0 0
        %1133 = vmatpush1.bf16.msra.mxu0 0
        %1134 = vmatprep.mubr.bf16.mxu0 0
        %1135 = vmatmul.mubr.bf16.gmra.mrb[0].mxu0 %v1100
        %v1136 = vpop.f32.mrb[0].mxu0
        %v1137 = vadd.f32 %v1086, %v1136
        %v1138 = vpop.f32.mrb[0].mxu0
        %v1139 = vpop.f32.mrb[0].mxu0
        %v1140 = vpop.f32.mrb[0].mxu0
        %1141 = vdwg.mxu0
        %vm1142 = vcmask 31744
        %v1143 = vsel %vm1142, %v1137, -inf
        %1144 = vmax.xlane.f32.xlu0 %v1143
        %v1145 = vpop.xlane.xlu0 %1144
        %v1146 = vsub.f32 %v1137, %v1145
        %v1147 = vmul.f32 %v1146, 1.442695
        %v1148 = vpow.pop %v1147
        %v1149 = vsel %vm1142, %v1148, 0.0
        %1150 = vadd.xlane.f32.xlu0 %v1149
        %v1151 = vpop.xlane.xlu0 %1150
        %v1152 = vrcp.pop %v1151
        %v1153 = vmul.f32 %v1148, %v1152
        %v1154 = vxor.u32 %v1137, 2147483648
        %v1155 = vmul.f32 %v1154, 1.442695
        %v1156 = vpow.pop %v1155
        %v1157 = vadd.f32 %v1156, 1.0
        %v1158 = vrcp.pop %v1157
        %v1159 = vmul.f32 1.0, %v1158
        %1161 = vrot.lane.b32.xlu0 %v1153, 4
        %v1162 = vpop.permute.xlu0 %1161
        %v1164 = vmul.f32 %v1159, %v1162
        %1166 = vrot.lane.b32.xlu0 %v1164, 124
        %v1167 = vpop.permute.xlu0 %1166
        %v1169 = vsel %vm1142, %v1167, 0.0
        %1170 = vadd.xlane.f32.xlu0 %v1169
        %v1171 = vpop.xlane.xlu0 %1170
        %v1172 = vadd.f32 %v1077, %v1171
        %v1173 = vsel %vm304, %v1172, 0.0
        %1174 = vadd.xlane.f32.xlu0 %v1173
        %v1175 = vpop.xlane.xlu0 %1174
        %v1176 = vmul.f32 %v1175, %v308
        %v1177 = vsub.f32 %v1172, %v1176
        %v1178 = vmul.f32 %v1177, %v1177
        %v1179 = vsel %vm304, %v1178, 0.0
        %1180 = vadd.xlane.f32.xlu0 %v1179
        %v1181 = vpop.xlane.xlu0 %1180
        %v1182 = vmul.f32 %v1181, %v308
        %v1183 = vadd.f32 %v1182, 1e-05
        %v1184 = vrsqrt.pop %v1183
        %v1185 = vmul.f32 %v1177, %v1184
        %v1186 = vpack.c.bf16 %v1185, %v1185
        %v1187 = vld [vmem:[%s5] sm:$0xf]
        %v1188 = vld [vmem:[%s5 + $0x4] sm:$0xf]
        %v1189 = vld [vmem:[%s5 + $0x8] sm:$0xf]
        %v1190 = vld [vmem:[%s5 + $0xc] sm:$0xf]
        %v1191 = vlaneseq
        %v1192 = vshrl.u32 %v1191, 7
        %v1193 = vsub.s32 1, %v1192
        %v1194 = vrot.slane %v303, %v1193
        %v1199 = vunpack.c.l.b16 %v1187
        %v1200 = vunpack.c.l.b16 %v1188
        %v1201 = vunpack.c.l.b16 %v1189
        %v1202 = vunpack.c.l.b16 %v1190
        %v1203 = vpack.c.b16 %v1200, %v1199
        %v1204 = vpack.c.b16 %v1202, %v1201
        %v1208 = vsel %vm304, %v1186, 0
        %1210 = vmatprep.subr.bf16.mxu0 0
        %1211 = vmatpush1.bf16.msra.mxu0 %v1203
        %1212 = vmatprep.subr.bf16.mxu0 0
        %1213 = vmatpush1.bf16.msra.mxu0 %v1204
        %1214 = vmatprep.subr.bf16.mxu0 0
        %1215 = vmatpush1.bf16.msra.mxu0 0
        %1216 = vmatprep.subr.bf16.mxu0 0
        %1217 = vmatpush1.bf16.msra.mxu0 0
        %1218 = vmatprep.subr.bf16.mxu0 0
        %1219 = vmatpush1.bf16.msra.mxu0 0
        %1220 = vmatprep.subr.bf16.mxu0 0
        %1221 = vmatpush1.bf16.msra.mxu0 0
        %1222 = vmatprep.subr.bf16.mxu0 0
        %1223 = vmatpush1.bf16.msra.mxu0 0
        %1224 = vmatprep.subr.bf16.mxu0 0
        %1225 = vmatpush1.bf16.msra.mxu0 0
        %1226 = vmatprep.subr.bf16.mxu0 0
        %1227 = vmatpush1.bf16.msra.mxu0 0
        %1228 = vmatprep.subr.bf16.mxu0 0
        %1229 = vmatpush1.bf16.msra.mxu0 0
        %1230 = vmatprep.subr.bf16.mxu0 0
        %1231 = vmatpush1.bf16.msra.mxu0 0
        %1232 = vmatprep.subr.bf16.mxu0 0
        %1233 = vmatpush1.bf16.msra.mxu0 0
        %1234 = vmatprep.subr.bf16.mxu0 0
        %1235 = vmatpush1.bf16.msra.mxu0 0
        %1236 = vmatprep.subr.bf16.mxu0 0
        %1237 = vmatpush1.bf16.msra.mxu0 0
        %1238 = vmatprep.subr.bf16.mxu0 0
        %1239 = vmatpush1.bf16.msra.mxu0 0
        %1240 = vmatprep.subr.bf16.mxu0 0
        %1241 = vmatpush1.bf16.msra.mxu0 0
        %1242 = vmatprep.mubr.bf16.mxu0 0
        %1243 = vmatmul.mubr.bf16.gmra.mrb[0].mxu0 %v1208
        %v1244 = vpop.f32.mrb[0].mxu0
        %v1245 = vadd.f32 %v1194, %v1244
        %v1246 = vpop.f32.mrb[0].mxu0
        %v1247 = vpop.f32.mrb[0].mxu0
        %v1248 = vpop.f32.mrb[0].mxu0
        %1249 = vdwg.mxu0
        %v1250 = vxor.u32 %v1245, 2147483648
        %v1251 = vmul.f32 %v1250, 1.442695
        %v1252 = vpow.pop %v1251
        %v1253 = vadd.f32 %v1252, 1.0
        %v1254 = vrcp.pop %v1253
        %v1255 = vmul.f32 1.0, %v1254
        %v1256 = vmul.f32 %v1245, %v1255
        %v1257 = vpack.c.bf16 %v1256, %v1256
        %v1258 = vld [vmem:[%s6] sm:$0xf]
        %v1259 = vld [vmem:[%s6 + $0x4] sm:$0xf]
        %v1260 = vld [vmem:[%s6 + $0x8] sm:$0xf]
        %v1261 = vld [vmem:[%s6 + $0xc] sm:$0xf]
        %v1262 = vld [vmem:[%s6 + $0x10] sm:$0xf]
        %v1263 = vld [vmem:[%s6 + $0x14] sm:$0xf]
        %v1264 = vld [vmem:[%s6 + $0x18] sm:$0xf]
        %v1265 = vld [vmem:[%s6 + $0x1c] sm:$0xf]
        %v1266 = vld [vmem:[%s6 + $0x20] sm:$0xf]
        %v1267 = vld [vmem:[%s6 + $0x24] sm:$0xf]
        %v1268 = vld [vmem:[%s6 + $0x28] sm:$0xf]
        %v1269 = vld [vmem:[%s6 + $0x2c] sm:$0xf]
        %v1270 = vld [vmem:[%s6 + $0x30] sm:$0xf]
        %v1271 = vld [vmem:[%s6 + $0x34] sm:$0xf]
        %v1272 = vld [vmem:[%s6 + $0x38] sm:$0xf]
        %v1273 = vld [vmem:[%s6 + $0x3c] sm:$0xf]
        %v1290 = vunpack.c.l.b16 %v1258
        %v1291 = vunpack.c.l.b16 %v1259
        %v1292 = vunpack.c.l.b16 %v1260
        %v1293 = vunpack.c.l.b16 %v1261
        %v1294 = vunpack.c.l.b16 %v1262
        %v1295 = vunpack.c.l.b16 %v1263
        %v1296 = vunpack.c.l.b16 %v1264
        %v1297 = vunpack.c.l.b16 %v1265
        %v1298 = vunpack.c.l.b16 %v1266
        %v1299 = vunpack.c.l.b16 %v1267
        %v1300 = vunpack.c.l.b16 %v1268
        %v1301 = vunpack.c.l.b16 %v1269
        %v1302 = vunpack.c.l.b16 %v1270
        %v1303 = vunpack.c.l.b16 %v1271
        %v1304 = vunpack.c.l.b16 %v1272
        %v1305 = vunpack.c.l.b16 %v1273
        %v1306 = vpack.c.b16 %v1291, %v1290
        %v1307 = vpack.c.b16 %v1293, %v1292
        %v1308 = vpack.c.b16 %v1295, %v1294
        %v1309 = vpack.c.b16 %v1297, %v1296
        %v1310 = vpack.c.b16 %v1299, %v1298
        %v1311 = vpack.c.b16 %v1301, %v1300
        %v1312 = vpack.c.b16 %v1303, %v1302
        %v1313 = vpack.c.b16 %v1305, %v1304
        %1322 = vmatprep.subr.bf16.mxu0 0
        %1323 = vmatpush1.bf16.msra.mxu0 %v1306
        %1324 = vmatprep.subr.bf16.mxu0 0
        %1325 = vmatpush1.bf16.msra.mxu0 %v1307
        %1326 = vmatprep.subr.bf16.mxu0 0
        %1327 = vmatpush1.bf16.msra.mxu0 %v1308
        %1328 = vmatprep.subr.bf16.mxu0 0
        %1329 = vmatpush1.bf16.msra.mxu0 %v1309
        %1330 = vmatprep.subr.bf16.mxu0 0
        %1331 = vmatpush1.bf16.msra.mxu0 %v1310
        %1332 = vmatprep.subr.bf16.mxu0 0
        %1333 = vmatpush1.bf16.msra.mxu0 %v1311
        %1334 = vmatprep.subr.bf16.mxu0 0
        %1335 = vmatpush1.bf16.msra.mxu0 %v1312
        %1336 = vmatprep.subr.bf16.mxu0 0
        %1337 = vmatpush1.bf16.msra.mxu0 %v1313
        %1338 = vmatprep.subr.bf16.mxu0 0
        %1339 = vmatpush1.bf16.msra.mxu0 0
        %1340 = vmatprep.subr.bf16.mxu0 0
        %1341 = vmatpush1.bf16.msra.mxu0 0
        %1342 = vmatprep.subr.bf16.mxu0 0
        %1343 = vmatpush1.bf16.msra.mxu0 0
        %1344 = vmatprep.subr.bf16.mxu0 0
        %1345 = vmatpush1.bf16.msra.mxu0 0
        %1346 = vmatprep.subr.bf16.mxu0 0
        %1347 = vmatpush1.bf16.msra.mxu0 0
        %1348 = vmatprep.subr.bf16.mxu0 0
        %1349 = vmatpush1.bf16.msra.mxu0 0
        %1350 = vmatprep.subr.bf16.mxu0 0
        %1351 = vmatpush1.bf16.msra.mxu0 0
        %1352 = vmatprep.subr.bf16.mxu0 0
        %1353 = vmatpush1.bf16.msra.mxu0 0
        %1354 = vmatprep.mubr.bf16.mxu0 0
        %1355 = vmatmul.mubr.bf16.gmra.mrb[0].mxu0 %v1257
        %v1356 = vpop.f32.mrb[0].mxu0
        %v1357 = vadd.f32 0.0, %v1356
        %v1358 = vpop.f32.mrb[0].mxu0
        %v1359 = vpop.f32.mrb[0].mxu0
        %v1360 = vpop.f32.mrb[0].mxu0
        %1361 = vdwg.mxu0
        %v1362 = vadd.f32 %v1172, %v1357
        %v1363 = vlaneseq
        %v1364 = vshrl.u32 %v1363, 7
        %v1365 = vsub.s32 2, %v1364
        %v1366 = vrot.slane %v303, %v1365
        %v1367 = vadd.f32 %v1362, %v1366
        %1368 = vst.msk [vmem:[%s296] sm:$0xff] %vm304, %v1367
        %s1369 = sand.u32 %s203, 1
        %s1370 = scalar_lea.sflag [#allocation3], %s1369
        %s1371 = sand.u32 %s203, 1
        %s1372 = smul.addr %s1371, 8
        %s1373 = scalar_lea.vmem [#allocation2], %s1372
        // Predicated region
        $region53: #{tpu_custom_call.1} parent=51 // pred_check
          %p1374 = pneg %p213
        $region54: #{tpu_custom_call.1} parent=51 // pred_check_branch
          %1376 = sbr.rel (%p1374) target = $region56
        $region55: #{tpu_custom_call.1} parent=51 // pred_region
          %s1378 = ssub.s32 128, 128
          %1379 = vsyncadd %s1370, %s1378
          %s1380 = smul.addr %s22, 128
          %s1381 = scalar_lea.hbm %s8, %s1380
          %s1383 = sshll.u32 %s1373, 4
          %s1384 = int_to_ptr.vmem [resolvable:$true] %s1383
          %1386 = dma.vmem_to_hbm [thread:$0]  %s1384, 128, %s1381, %s1370
        $region56: #{tpu_custom_call.1} parent=51 // pred_fallthru
          _
      $region52: #{tpu_custom_call.1} parent=5 // pred_fallthru
        _
      %p1387 = scmp.le.s32.totalorder 2, %s17
      // Predicated region
      $region57: #{tpu_custom_call.1} parent=5 // pred_check
        %p1388 = pneg %p1387
      $region58: #{tpu_custom_call.1} parent=5 // pred_check_branch
        %1390 = sbr.rel (%p1388) target = $region60
      $region59: #{tpu_custom_call.1} parent=5 // pred_region
        %s1391 = ssub.s32 %s17, 2
        // Predicated region
        $region61: #{tpu_custom_call.1} parent=59 // pred_check
          %p1392 = pneg %p219
        $region62: #{tpu_custom_call.1} parent=59 // pred_check_branch
          %1394 = sbr.rel (%p1392) target = $region64
        $region63: #{tpu_custom_call.1} parent=59 // pred_region
          %s1395 = sand.u32 %s204, 1
          %s1396 = scalar_lea.sflag [#allocation3], %s1395
          %s1397 = sand.u32 %s204, 1
          %s1398 = smul.addr %s1397, 8
          %s1399 = scalar_lea.vmem [#allocation2], %s1398
          %1400 = dma.done %s1396, 128
        $region64: #{tpu_custom_call.1} parent=59 // pred_fallthru
          _
      $region60: #{tpu_custom_call.1} parent=5 // pred_fallthru
        _
    $region6: #{tpu_custom_call.1} parent=1 // loop_footer
      %s21 = sadd.s32 1, %s17
    $region7: #{tpu_custom_call.1} parent=1 // loop_footer_branch
      %16 = sbr.rel target = $region3
    $region8: #{tpu_custom_call.1} parent=1 // loop_exit
      _
    %1401 = vsyncpa [#allocation3], 1
    %s1402 = scalar_lea.sflag [#allocation3], 1
    %1403 = vsyncpa %s1402, 1

</llo_original>
